<compile_context>
chip_gen: v5e
topology: v5e:2x2
jax: 0.10.0
libtpu: 0.0.40
codegen_flags: <defaults>
</compile_context>

<pallas_src>
import math
from functools import partial

import jax
import jax.numpy as jnp
from jax.experimental import pallas as pl
from jax.experimental.pallas import tpu as pltpu

# Explicit scoped-VMEM limit: under v7x's 64 MiB physical VMEM, generous for
# v5e/v6e (128 MiB parts).
VMEM_LIMIT_BYTES = 48 * 1024 * 1024


def _sublane_align(dtype):
    """Sublane tile alignment matching the dtype's packing (rows per sublane)."""
    itemsize = jnp.dtype(dtype).itemsize
    if itemsize >= 4:
        return 8
    if itemsize == 2:
        return 16
    return 32


def _round_up(x, m):
    return ((x + m - 1) // m) * m


def _tile(dim, preferred, align):
    """Largest tile <= `preferred` that divides `dim` and is a multiple of
    `align`; falls back to the full dim (a block equal to the array dim is
    always legal under the (8,128) tiling rule)."""
    if dim <= preferred:
        return dim
    t = (preferred // align) * align
    while t >= align:
        if dim % t == 0:
            return t
        t -= align
    return dim


# ----------------------------------------------------------------------------
# Tiled linear kernel:  y = x @ Wt + b   (Wt stored pre-transposed as [K, N])
# ----------------------------------------------------------------------------

def _linear_kernel(x_ref, wt_ref, b_ref, o_ref, acc_ref):
    k = pl.program_id(2)

    @pl.when(k == 0)
    def _():
        acc_ref[...] = jnp.zeros_like(acc_ref)

    # Native-dtype MXU operands, f32 accumulation.
    acc_ref[...] += jnp.dot(x_ref[...], wt_ref[...],
                            preferred_element_type=jnp.float32)

    @pl.when(k == pl.num_programs(2) - 1)
    def _():
        # Bias add hides under the MXU drain of the last K step.
        o_ref[...] = (acc_ref[...] + b_ref[...].astype(jnp.float32)
                      ).astype(o_ref.dtype)


def linear_pallas(x2d, wt, b, *, tm_pref=512, tn_pref=512, tk_pref=1024):
    """x2d: [M, K], wt: [K, N] (pre-transposed at init), b: [N] -> [M, N]."""
    M, K = x2d.shape
    N = wt.shape[1]
    b2d = b.reshape(1, N)

    align_m = _sublane_align(x2d.dtype)
    tm = _tile(M, tm_pref, align_m)
    pad_m = 0
    if tm > tm_pref:
        # Large, non-divisible token dim: pad rows instead of letting the block
        # fall back to the full axis (caps the per-block VMEM on v7x).
        Mp = _round_up(M, tm_pref)
        pad_m = Mp - M
        tm = tm_pref
        x2d = jnp.pad(x2d, ((0, pad_m), (0, 0)))
    Mp = M + pad_m

    tn = _tile(N, tn_pref, 128)   # lane-dense
    tk = _tile(K, tk_pref, 128)
    grid = (Mp // tm, N // tn, K // tk)

    out = pl.pallas_call(
        _linear_kernel,
        out_shape=jax.ShapeDtypeStruct((Mp, N), x2d.dtype),
        grid_spec=pltpu.PrefetchScalarGridSpec(
            num_scalar_prefetch=0,
            grid=grid,
            in_specs=[
                pl.BlockSpec((tm, tk), lambda i, j, k: (i, k)),
                pl.BlockSpec((tk, tn), lambda i, j, k: (k, j)),
                pl.BlockSpec((1, tn), lambda i, j, k: (0, j)),
            ],
            out_specs=pl.BlockSpec((tm, tn), lambda i, j, k: (i, j)),
            scratch_shapes=[pltpu.VMEM((tm, tn), jnp.float32)],
        ),
        compiler_params=pltpu.CompilerParams(
            dimension_semantics=("parallel", "parallel", "arbitrary"),
            vmem_limit_bytes=VMEM_LIMIT_BYTES,
        ),
    )(x2d, wt, b2d)
    return out[:M] if pad_m else out


# ----------------------------------------------------------------------------
# Standalone per-head RMSNorm kernel (applied to k ONCE, outside attention).
#   x: [BH, L, D], w: [D]  ->  [BH, L, D]
# ----------------------------------------------------------------------------

def _rmsnorm_kernel(x_ref, w_ref, o_ref, *, eps):
    x = x_ref[...].astype(jnp.float32)
    inv = jax.lax.rsqrt(jnp.mean(x * x, axis=-1, keepdims=True) + eps)
    o_ref[...] = (x * inv * w_ref[...].astype(jnp.float32)).astype(o_ref.dtype)


def _pick_heads_block(bh, d, target_lanes=512):
    """Heads per grid step: batch enough heads to amortize per-step overhead
    for small D.  No megacore clamp — the head/q axes are both 'parallel'."""
    want = max(1, target_lanes // max(d, 1))
    hb = 1
    for c in range(1, bh + 1):
        if bh % c == 0 and c <= want:
            hb = c
    return hb


def rmsnorm_pallas(x, w, *, eps=1e-6):
    BH, L, D = x.shape
    align = _sublane_align(x.dtype)
    hb = _pick_heads_block(BH, D)
    tl = _tile(L, 512, align)
    grid = (BH // hb, L // tl)
    w2d = w.reshape(1, D)

    return pl.pallas_call(
        partial(_rmsnorm_kernel, eps=eps),
        out_shape=jax.ShapeDtypeStruct((BH, L, D), x.dtype),
        grid_spec=pltpu.PrefetchScalarGridSpec(
            num_scalar_prefetch=0,
            grid=grid,
            in_specs=[
                pl.BlockSpec((hb, tl, D), lambda h, i: (h, i, 0)),
                pl.BlockSpec((1, D), lambda h, i: (0, 0)),
            ],
            out_specs=pl.BlockSpec((hb, tl, D), lambda h, i: (h, i, 0)),
        ),
        compiler_params=pltpu.CompilerParams(
            dimension_semantics=("parallel", "parallel"),
            vmem_limit_bytes=VMEM_LIMIT_BYTES,
        ),
    )(x, w2d)


# ----------------------------------------------------------------------------
# Flash-style attention kernel with fused per-head RMSNorm on q (k already
# normalized by rmsnorm_pallas).
#   q: [BH, Lq, D], k/v: [BH, Lkv, D]  ->  ctx: [BH, Lq, D]
# ----------------------------------------------------------------------------

def _flash_attn_kernel(q_ref, k_ref, v_ref, qw_ref, o_ref,
                       qn_ref, m_ref, l_ref, acc_ref, *, scale, eps):
    kv = pl.program_id(2)

    @pl.when(kv == 0)
    def _():
        # RMSNorm(q) (f32 math) once per (head-block, q-tile); fold in the
        # 1/sqrt(D) score scale, then cast back to native dtype so the QK
        # matmul runs on native (bf16-capable) MXU operands.
        q = q_ref[...].astype(jnp.float32)
        qn = q * jax.lax.rsqrt(jnp.mean(q * q, axis=-1, keepdims=True) + eps)
        qn = qn * qw_ref[...].astype(jnp.float32) * scale
        qn_ref[...] = qn.astype(qn_ref.dtype)
        m_ref[...] = jnp.full_like(m_ref, -jnp.inf)
        l_ref[...] = jnp.zeros_like(l_ref)
        acc_ref[...] = jnp.zeros_like(acc_ref)

    # Batched-over-heads matmuls; f32 accumulation via preferred_element_type.
    s = jnp.einsum("hqd,hkd->hqk", qn_ref[...], k_ref[...],
                   preferred_element_type=jnp.float32)        # (hb, tq, tkv)

    m_prev = m_ref[...]
    m_new = jnp.maximum(m_prev, s.max(axis=-1, keepdims=True))
    alpha = jnp.exp(m_prev - m_new)
    p = jnp.exp(s - m_new)
    l_ref[...] = alpha * l_ref[...] + p.sum(axis=-1, keepdims=True)
    acc_ref[...] = alpha * acc_ref[...] + jnp.einsum(
        "hqk,hkd->hqd", p.astype(v_ref.dtype), v_ref[...],
        preferred_element_type=jnp.float32)
    m_ref[...] = m_new

    @pl.when(kv == pl.num_programs(2) - 1)
    def _():
        inv_l = pl.reciprocal(l_ref[...], approx=True)   # EUP slot, ~free
        o_ref[...] = (acc_ref[...] * inv_l).astype(o_ref.dtype)


def flash_attention_pallas(q, k, v, q_norm_w, *, scale, eps=1e-6,
                           tq_pref=256, tkv_pref=512):
    BH, Lq, D = q.shape
    Lkv = k.shape[1]

    align = _sublane_align(q.dtype)
    hb = _pick_heads_block(BH, D)
    tq = _tile(Lq, tq_pref, align)     # 256 fills the 2x256 MXU on v6e/v7x
    tkv = _tile(Lkv, tkv_pref, align)  # fewer kv steps -> less acc-rescale tax
    grid = (BH // hb, Lq // tq, Lkv // tkv)

    qw = q_norm_w.reshape(1, D)

    kernel = partial(_flash_attn_kernel, scale=scale, eps=eps)
    return pl.pallas_call(
        kernel,
        out_shape=jax.ShapeDtypeStruct((BH, Lq, D), q.dtype),
        grid_spec=pltpu.PrefetchScalarGridSpec(
            num_scalar_prefetch=0,
            grid=grid,
            in_specs=[
                pl.BlockSpec((hb, tq, D), lambda h, i, kv: (h, i, 0)),
                pl.BlockSpec((hb, tkv, D), lambda h, i, kv: (h, kv, 0)),
                pl.BlockSpec((hb, tkv, D), lambda h, i, kv: (h, kv, 0)),
                pl.BlockSpec((1, D), lambda h, i, kv: (0, 0)),
            ],
            out_specs=pl.BlockSpec((hb, tq, D), lambda h, i, kv: (h, i, 0)),
            scratch_shapes=[
                pltpu.VMEM((hb, tq, D), q.dtype),       # normalized, pre-scaled q
                pltpu.VMEM((hb, tq, 1), jnp.float32),   # running max
                pltpu.VMEM((hb, tq, 1), jnp.float32),   # running sum
                pltpu.VMEM((hb, tq, D), jnp.float32),   # output accumulator
            ],
        ),
        compiler_params=pltpu.CompilerParams(
            dimension_semantics=("parallel", "parallel", "arbitrary"),
            vmem_limit_bytes=VMEM_LIMIT_BYTES,
        ),
    )(q, k, v, qw)


# ----------------------------------------------------------------------------
# Module: parameter init + forward
# ----------------------------------------------------------------------------

def xavier_uniform(key, shape, dtype=jnp.float32):
    fan_out, fan_in = shape
    limit = math.sqrt(6.0 / (fan_in + fan_out))
    return jax.random.uniform(key, shape, dtype, minval=-limit, maxval=limit)


def init_cross_attention_params(key, hidden_size, heads_num, dtype=jnp.float32):
    head_dim = hidden_size // heads_num
    kq, kkv, kd = jax.random.split(key, 3)
    # Projection weights stored PRE-TRANSPOSED as [in_features, out_features]
    # (transpose happens exactly once here, not per forward call), so the
    # matmul kernel reads lane-dense [tk, tn] tiles straight from HBM.
    return {
        "query_wt": xavier_uniform(kq, (hidden_size, hidden_size), dtype).T,
        "query_b": jnp.zeros((hidden_size,), dtype),
        "kv_wt": xavier_uniform(kkv, (2 * hidden_size, hidden_size), dtype).T,
        "kv_b": jnp.zeros((2 * hidden_size,), dtype),
        "dense_wt": xavier_uniform(kd, (hidden_size, hidden_size), dtype).T,
        "dense_b": jnp.zeros((hidden_size,), dtype),
        "q_norm_w": jnp.ones((head_dim,), dtype),
        "k_norm_w": jnp.ones((head_dim,), dtype),
    }


def cross_attention_forward(params, hidden_states, encoder_outputs,
                            hidden_size, heads_num):
    B, Lq, H = hidden_states.shape
    _, Lkv, _ = encoder_outputs.shape
    head_dim = hidden_size // heads_num
    scale = 1.0 / math.sqrt(head_dim)

    # q / kv projections (tiled Pallas matmul kernels, bias fused in epilogue).
    q = linear_pallas(hidden_states.reshape(B * Lq, H),
                      params["query_wt"], params["query_b"])          # [B*Lq, H]
    kv = linear_pallas(encoder_outputs.reshape(B * Lkv, H),
                       params["kv_wt"], params["kv_b"])               # [B*Lkv, 2H]
    key_, value_ = jnp.split(kv, 2, axis=-1)                          # [B*Lkv, H]

    # Head split: [B*L, H] -> [B*heads, L, D].
    # TODO(synk): with production head_dim (multiple of 128) these split/merge
    # transposes can be eliminated by indexing heads directly in the attention
    # BlockSpecs over a [B, L, heads, D] view; at head_dim=8 such blocks
    # violate the (8,128) lane rule, so they remain fused XLA transposes here.
    def to_heads(x, L):
        x = x.reshape(B, L, heads_num, head_dim)
        return jnp.transpose(x, (0, 2, 1, 3)).reshape(B * heads_num, L, head_dim)

    qh = to_heads(q, Lq)
    kh = to_heads(key_, Lkv)
    vh = to_heads(value_, Lkv)

    # k-RMSNorm once (standalone kernel); previously recomputed per q tile.
    kh = rmsnorm_pallas(kh, params["k_norm_w"], eps=1e-6)

    # Fused RMSNorm(q) + flash attention (Pallas kernel).
    ctx = flash_attention_pallas(qh, kh, vh, params["q_norm_w"],
                                 scale=scale, eps=1e-6)               # [B*heads, Lq, D]

    # Merge heads back: [B, heads, Lq, D] -> [B*Lq, hidden].
    ctx = ctx.reshape(B, heads_num, Lq, head_dim)
    ctx = jnp.transpose(ctx, (0, 2, 1, 3)).reshape(B * Lq, hidden_size)

    # Output projection (tiled Pallas matmul kernel).
    out = linear_pallas(ctx, params["dense_wt"], params["dense_b"])
    return out.reshape(B, Lq, hidden_size)


# ----------------------------------------------------------------------------
# Pure-JAX reference (sanity check)
# ----------------------------------------------------------------------------

def cross_attention_reference(params, hidden_states, encoder_outputs,
                              hidden_size, heads_num):
    B, Lq, H = hidden_states.shape
    _, Lkv, _ = encoder_outputs.shape
    head_dim = hidden_size // heads_num
    scale = 1.0 / math.sqrt(head_dim)

    q = hidden_states @ params["query_wt"] + params["query_b"]
    kv = encoder_outputs @ params["kv_wt"] + params["kv_b"]
    k, v = jnp.split(kv, 2, axis=-1)

    def to_heads(x, L):
        return jnp.transpose(x.reshape(B, L, heads_num, head_dim), (0, 2, 1, 3))

    qh, kh, vh = to_heads(q, Lq), to_heads(k, Lkv), to_heads(v, Lkv)

    def rmsnorm(x, w):
        return x * jax.lax.rsqrt(jnp.mean(x * x, axis=-1, keepdims=True) + 1e-6) * w

    qh = rmsnorm(qh, params["q_norm_w"])
    kh = rmsnorm(kh, params["k_norm_w"])

    s = jnp.einsum("bhqd,bhkd->bhqk", qh, kh) * scale
    p = jax.nn.softmax(s, axis=-1)
    ctx = jnp.einsum("bhqk,bhkd->bhqd", p, vh)
    ctx = jnp.transpose(ctx, (0, 2, 1, 3)).reshape(B, Lq, hidden_size)
    return ctx @ params["dense_wt"] + params["dense_b"]


# ----------------------------------------------------------------------------
# main
# ----------------------------------------------------------------------------

if __name__ == "__main__":
    hidden_size = 32
    heads_num = 4
    B, Lq, Lkv = 2, 16, 8

    root = jax.random.PRNGKey(0)
    k_param, k_h, k_e = jax.random.split(root, 3)

    params = init_cross_attention_params(k_param, hidden_size, heads_num)
    hidden_states = jax.random.normal(k_h, (B, Lq, hidden_size), jnp.float32)
    encoder_outputs = jax.random.normal(k_e, (B, Lkv, hidden_size), jnp.float32)

    fwd = jax.jit(cross_attention_forward, static_argnums=(3, 4))
    out = fwd(params, hidden_states, encoder_outputs, hidden_size, heads_num)
    out = jax.block_until_ready(out)

    ref = cross_attention_reference(params, hidden_states, encoder_outputs,
                                    hidden_size, heads_num)
    assert out.shape == (B, Lq, hidden_size)
    # Tolerance accounts for the approx (EUP) reciprocal in the softmax finalize.
    assert jnp.allclose(out, ref, atol=1e-2, rtol=1e-2), "mismatch vs reference"

    print("KERNEL_OK")
</pallas_src>

<mosaic_0001>
module attributes {stable_mosaic.version = 11 : i64} {
  func.func @_linear_kernel(%arg0: i32, %arg1: i32, %arg2: i32, %arg3: memref<16x32xf32, #tpu.memory_space<vmem>>, %arg4: memref<32x64xf32, #tpu.memory_space<vmem>>, %arg5: memref<1x64xf32, #tpu.memory_space<vmem>>, %arg6: memref<16x64xf32, #tpu.memory_space<vmem>>, %arg7: memref<16x64xf32, #tpu.memory_space<vmem>>) attributes {dimension_semantics = [#tpu.dimension_semantics<parallel>, #tpu.dimension_semantics<parallel>, #tpu.dimension_semantics<arbitrary>], iteration_bounds = array<i64: 1, 1, 1>, scalar_prefetch = 0 : i64, scratch_operands = 1 : i64, tpu.core_type = #tpu.core_type<tc>, window_params = [{transform_indices = @transform_0, window_bounds = array<i64: 16, 32>}, {transform_indices = @transform_1, window_bounds = array<i64: 32, 64>}, {transform_indices = @transform_2, window_bounds = array<i64: 1, 64>}, {transform_indices = @transform_3, window_bounds = array<i64: 16, 64>}]} {
    %c0_i32 = arith.constant 0 : i32
    %0 = arith.cmpi eq, %arg2, %c0_i32 : i32
    %1 = arith.extui %0 : i1 to i32
    %c0_i32_0 = arith.constant 0 : i32
    %2 = arith.cmpi ne, %1, %c0_i32_0 : i32
    scf.if %2 {
      %cst_10 = arith.constant 0.000000e+00 : f32
      %12 = vector.broadcast %cst_10 : f32 to vector<16x64xf32>
      %c0_11 = arith.constant 0 : index
      %c0_12 = arith.constant 0 : index
      %13 = vector.load %arg7[%c0_11, %c0_12] : memref<16x64xf32, #tpu.memory_space<vmem>>, vector<16x64xf32>
      tpu.vector_store %arg7[%c0_11, %c0_12], %12 {strides = array<i32>} : memref<16x64xf32, #tpu.memory_space<vmem>>, vector<16x64xf32>,
    } else {
    }
    %c0 = arith.constant 0 : index
    %c0_1 = arith.constant 0 : index
    %3 = vector.load %arg7[%c0, %c0_1] : memref<16x64xf32, #tpu.memory_space<vmem>>, vector<16x64xf32>
    %c0_2 = arith.constant 0 : index
    %c0_3 = arith.constant 0 : index
    %4 = vector.load %arg3[%c0_2, %c0_3] : memref<16x32xf32, #tpu.memory_space<vmem>>, vector<16x32xf32>
    %c0_4 = arith.constant 0 : index
    %c0_5 = arith.constant 0 : index
    %5 = vector.load %arg4[%c0_4, %c0_5] : memref<32x64xf32, #tpu.memory_space<vmem>>, vector<32x64xf32>
    %cst = arith.constant dense<0.000000e+00> : vector<16x64xf32>
    %6 = tpu.matmul %4, %5, %cst {dimension_numbers = #tpu.dot_dimension_numbers<[1], [0], [0], [1], [0, 0, 1, 1], [], []>} : vector<16x32xf32>, vector<32x64xf32>, vector<16x64xf32> -> vector<16x64xf32>
    %7 = arith.addf %3, %6 : vector<16x64xf32>
    %c0_6 = arith.constant 0 : index
    %c0_7 = arith.constant 0 : index
    %8 = vector.load %arg7[%c0_6, %c0_7] : memref<16x64xf32, #tpu.memory_space<vmem>>, vector<16x64xf32>
    tpu.vector_store %arg7[%c0_6, %c0_7], %7 {strides = array<i32>} : memref<16x64xf32, #tpu.memory_space<vmem>>, vector<16x64xf32>,
    %c0_i32_8 = arith.constant 0 : i32
    %9 = arith.cmpi eq, %arg2, %c0_i32_8 : i32
    %10 = arith.extui %9 : i1 to i32
    %c0_i32_9 = arith.constant 0 : i32
    %11 = arith.cmpi ne, %10, %c0_i32_9 : i32
    scf.if %11 {
      %c0_10 = arith.constant 0 : index
      %c0_11 = arith.constant 0 : index
      %12 = vector.load %arg7[%c0_10, %c0_11] : memref<16x64xf32, #tpu.memory_space<vmem>>, vector<16x64xf32>
      %c0_12 = arith.constant 0 : index
      %c0_13 = arith.constant 0 : index
      %13 = vector.load %arg5[%c0_12, %c0_13] : memref<1x64xf32, #tpu.memory_space<vmem>>, vector<1x64xf32>
      %14 = vector.broadcast %13 : vector<1x64xf32> to vector<16x64xf32>
      %15 = arith.addf %12, %14 : vector<16x64xf32>
      %c0_14 = arith.constant 0 : index
      %c0_15 = arith.constant 0 : index
      %16 = vector.load %arg6[%c0_14, %c0_15] : memref<16x64xf32, #tpu.memory_space<vmem>>, vector<16x64xf32>
      tpu.vector_store %arg6[%c0_14, %c0_15], %15 {strides = array<i32>} : memref<16x64xf32, #tpu.memory_space<vmem>>, vector<16x64xf32>,
    } else {
    }
    return
  }
  func.func @transform_0(%arg0: i32, %arg1: i32, %arg2: i32) -> (i32, i32) {
    %c0_i32 = arith.constant 0 : i32
    return %arg0, %arg2 : i32, i32
  }
  func.func @transform_1(%arg0: i32, %arg1: i32, %arg2: i32) -> (i32, i32) {
    %c0_i32 = arith.constant 0 : i32
    return %arg2, %arg1 : i32, i32
  }
  func.func @transform_2(%arg0: i32, %arg1: i32, %arg2: i32) -> (i32, i32) {
    %c0_i32 = arith.constant 0 : i32
    %c0_i32_0 = arith.constant 0 : i32
    return %c0_i32, %arg1 : i32, i32
  }
  func.func @transform_3(%arg0: i32, %arg1: i32, %arg2: i32) -> (i32, i32) {
    %c0_i32 = arith.constant 0 : i32
    return %arg0, %arg1 : i32, i32
  }
}

module attributes {stable_mosaic.version = 11 : i64} {
  func.func @_linear_kernel(%arg0: i32, %arg1: i32, %arg2: i32, %arg3: memref<32x32xf32, #tpu.memory_space<vmem>>, %arg4: memref<32x32xf32, #tpu.memory_space<vmem>>, %arg5: memref<1x32xf32, #tpu.memory_space<vmem>>, %arg6: memref<32x32xf32, #tpu.memory_space<vmem>>, %arg7: memref<32x32xf32, #tpu.memory_space<vmem>>) attributes {dimension_semantics = [#tpu.dimension_semantics<parallel>, #tpu.dimension_semantics<parallel>, #tpu.dimension_semantics<arbitrary>], iteration_bounds = array<i64: 1, 1, 1>, scalar_prefetch = 0 : i64, scratch_operands = 1 : i64, tpu.core_type = #tpu.core_type<tc>, window_params = [{transform_indices = @transform_0, window_bounds = array<i64: 32, 32>}, {transform_indices = @transform_1, window_bounds = array<i64: 32, 32>}, {transform_indices = @transform_2, window_bounds = array<i64: 1, 32>}, {transform_indices = @transform_3, window_bounds = array<i64: 32, 32>}]} {
    %c0_i32 = arith.constant 0 : i32
    %0 = arith.cmpi eq, %arg2, %c0_i32 : i32
    %1 = arith.extui %0 : i1 to i32
    %c0_i32_0 = arith.constant 0 : i32
    %2 = arith.cmpi ne, %1, %c0_i32_0 : i32
    scf.if %2 {
      %cst_10 = arith.constant 0.000000e+00 : f32
      %12 = vector.broadcast %cst_10 : f32 to vector<32x32xf32>
      %c0_11 = arith.constant 0 : index
      %c0_12 = arith.constant 0 : index
      %13 = vector.load %arg7[%c0_11, %c0_12] : memref<32x32xf32, #tpu.memory_space<vmem>>, vector<32x32xf32>
      tpu.vector_store %arg7[%c0_11, %c0_12], %12 {strides = array<i32>} : memref<32x32xf32, #tpu.memory_space<vmem>>, vector<32x32xf32>,
    } else {
    }
    %c0 = arith.constant 0 : index
    %c0_1 = arith.constant 0 : index
    %3 = vector.load %arg7[%c0, %c0_1] : memref<32x32xf32, #tpu.memory_space<vmem>>, vector<32x32xf32>
    %c0_2 = arith.constant 0 : index
    %c0_3 = arith.constant 0 : index
    %4 = vector.load %arg3[%c0_2, %c0_3] : memref<32x32xf32, #tpu.memory_space<vmem>>, vector<32x32xf32>
    %c0_4 = arith.constant 0 : index
    %c0_5 = arith.constant 0 : index
    %5 = vector.load %arg4[%c0_4, %c0_5] : memref<32x32xf32, #tpu.memory_space<vmem>>, vector<32x32xf32>
    %cst = arith.constant dense<0.000000e+00> : vector<32x32xf32>
    %6 = tpu.matmul %4, %5, %cst {dimension_numbers = #tpu.dot_dimension_numbers<[1], [0], [0], [1], [0, 0, 1, 1], [], []>} : vector<32x32xf32>, vector<32x32xf32>, vector<32x32xf32> -> vector<32x32xf32>
    %7 = arith.addf %3, %6 : vector<32x32xf32>
    %c0_6 = arith.constant 0 : index
    %c0_7 = arith.constant 0 : index
    %8 = vector.load %arg7[%c0_6, %c0_7] : memref<32x32xf32, #tpu.memory_space<vmem>>, vector<32x32xf32>
    tpu.vector_store %arg7[%c0_6, %c0_7], %7 {strides = array<i32>} : memref<32x32xf32, #tpu.memory_space<vmem>>, vector<32x32xf32>,
    %c0_i32_8 = arith.constant 0 : i32
    %9 = arith.cmpi eq, %arg2, %c0_i32_8 : i32
    %10 = arith.extui %9 : i1 to i32
    %c0_i32_9 = arith.constant 0 : i32
    %11 = arith.cmpi ne, %10, %c0_i32_9 : i32
    scf.if %11 {
      %c0_10 = arith.constant 0 : index
      %c0_11 = arith.constant 0 : index
      %12 = vector.load %arg7[%c0_10, %c0_11] : memref<32x32xf32, #tpu.memory_space<vmem>>, vector<32x32xf32>
      %c0_12 = arith.constant 0 : index
      %c0_13 = arith.constant 0 : index
      %13 = vector.load %arg5[%c0_12, %c0_13] : memref<1x32xf32, #tpu.memory_space<vmem>>, vector<1x32xf32>
      %14 = vector.broadcast %13 : vector<1x32xf32> to vector<32x32xf32>
      %15 = arith.addf %12, %14 : vector<32x32xf32>
      %c0_14 = arith.constant 0 : index
      %c0_15 = arith.constant 0 : index
      %16 = vector.load %arg6[%c0_14, %c0_15] : memref<32x32xf32, #tpu.memory_space<vmem>>, vector<32x32xf32>
      tpu.vector_store %arg6[%c0_14, %c0_15], %15 {strides = array<i32>} : memref<32x32xf32, #tpu.memory_space<vmem>>, vector<32x32xf32>,
    } else {
    }
    return
  }
  func.func @transform_0(%arg0: i32, %arg1: i32, %arg2: i32) -> (i32, i32) {
    %c0_i32 = arith.constant 0 : i32
    return %arg0, %arg2 : i32, i32
  }
  func.func @transform_1(%arg0: i32, %arg1: i32, %arg2: i32) -> (i32, i32) {
    %c0_i32 = arith.constant 0 : i32
    return %arg2, %arg1 : i32, i32
  }
  func.func @transform_2(%arg0: i32, %arg1: i32, %arg2: i32) -> (i32, i32) {
    %c0_i32 = arith.constant 0 : i32
    %c0_i32_0 = arith.constant 0 : i32
    return %c0_i32, %arg1 : i32, i32
  }
  func.func @transform_3(%arg0: i32, %arg1: i32, %arg2: i32) -> (i32, i32) {
    %c0_i32 = arith.constant 0 : i32
    return %arg0, %arg1 : i32, i32
  }
}

module attributes {stable_mosaic.version = 11 : i64} {
  func.func @_rmsnorm_kernel(%arg0: i32, %arg1: i32, %arg2: memref<8x8x8xf32, #tpu.memory_space<vmem>>, %arg3: memref<1x8xf32, #tpu.memory_space<vmem>>, %arg4: memref<8x8x8xf32, #tpu.memory_space<vmem>>) attributes {dimension_semantics = [#tpu.dimension_semantics<parallel>, #tpu.dimension_semantics<parallel>], iteration_bounds = array<i64: 1, 1>, scalar_prefetch = 0 : i64, scratch_operands = 0 : i64, tpu.core_type = #tpu.core_type<tc>, window_params = [{transform_indices = @transform_0, window_bounds = array<i64: 8, 8, 8>}, {pipeline_mode = #tpu.pipeline_mode<synchronous>, transform_indices = @transform_1, window_bounds = array<i64: 1, 8>}, {transform_indices = @transform_2, window_bounds = array<i64: 8, 8, 8>}]} {
    %c0 = arith.constant 0 : index
    %c0_0 = arith.constant 0 : index
    %c0_1 = arith.constant 0 : index
    %0 = vector.load %arg2[%c0, %c0_0, %c0_1] : memref<8x8x8xf32, #tpu.memory_space<vmem>>, vector<8x8x8xf32>
    %1 = arith.mulf %0, %0 : vector<8x8x8xf32>
    %cst = arith.constant dense<0.000000e+00> : vector<8x8xf32>
    %2 = vector.multi_reduction <add>, %1, %cst [2] : vector<8x8x8xf32> to vector<8x8xf32>
    %3 = vector.shape_cast %2 : vector<8x8xf32> to vector<8x8x1xf32>
    %cst_2 = arith.constant 8.000000e+00 : f32
    %4 = vector.broadcast %cst_2 : f32 to vector<8x8x1xf32>
    %5 = arith.divf %3, %4 : vector<8x8x1xf32>
    %cst_3 = arith.constant 9.99999997E-7 : f32
    %6 = vector.broadcast %cst_3 : f32 to vector<8x8x1xf32>
    %7 = arith.addf %5, %6 : vector<8x8x1xf32>
    %8 = math.rsqrt %7 : vector<8x8x1xf32>
    %9 = vector.broadcast %8 : vector<8x8x1xf32> to vector<8x8x8xf32>
    %10 = arith.mulf %0, %9 : vector<8x8x8xf32>
    %c0_4 = arith.constant 0 : index
    %c0_5 = arith.constant 0 : index
    %11 = vector.load %arg3[%c0_4, %c0_5] : memref<1x8xf32, #tpu.memory_space<vmem>>, vector<1x8xf32>
    %12 = vector.shape_cast %11 : vector<1x8xf32> to vector<1x1x8xf32>
    %13 = vector.broadcast %12 : vector<1x1x8xf32> to vector<8x8x8xf32>
    %14 = arith.mulf %10, %13 : vector<8x8x8xf32>
    %c0_6 = arith.constant 0 : index
    %c0_7 = arith.constant 0 : index
    %c0_8 = arith.constant 0 : index
    %15 = vector.load %arg4[%c0_6, %c0_7, %c0_8] : memref<8x8x8xf32, #tpu.memory_space<vmem>>, vector<8x8x8xf32>
    tpu.vector_store %arg4[%c0_6, %c0_7, %c0_8], %14 {strides = array<i32>} : memref<8x8x8xf32, #tpu.memory_space<vmem>>, vector<8x8x8xf32>,
    return
  }
  func.func @transform_0(%arg0: i32, %arg1: i32) -> (i32, i32, i32) {
    %c0_i32 = arith.constant 0 : i32
    %c0_i32_0 = arith.constant 0 : i32
    return %arg0, %arg1, %c0_i32 : i32, i32, i32
  }
  func.func @transform_1(%arg0: i32, %arg1: i32) -> (i32, i32) {
    %c0_i32 = arith.constant 0 : i32
    %c0_i32_0 = arith.constant 0 : i32
    %c0_i32_1 = arith.constant 0 : i32
    return %c0_i32, %c0_i32_0 : i32, i32
  }
  func.func @transform_2(%arg0: i32, %arg1: i32) -> (i32, i32, i32) {
    %c0_i32 = arith.constant 0 : i32
    %c0_i32_0 = arith.constant 0 : i32
    return %arg0, %arg1, %c0_i32 : i32, i32, i32
  }
}

module attributes {stable_mosaic.version = 11 : i64} {
  func.func @_flash_attn_kernel(%arg0: i32, %arg1: i32, %arg2: i32, %arg3: memref<8x16x8xf32, #tpu.memory_space<vmem>>, %arg4: memref<8x8x8xf32, #tpu.memory_space<vmem>>, %arg5: memref<8x8x8xf32, #tpu.memory_space<vmem>>, %arg6: memref<1x8xf32, #tpu.memory_space<vmem>>, %arg7: memref<8x16x8xf32, #tpu.memory_space<vmem>>, %arg8: memref<8x16x8xf32, #tpu.memory_space<vmem>>, %arg9: memref<8x16x1xf32, #tpu.memory_space<vmem>>, %arg10: memref<8x16x1xf32, #tpu.memory_space<vmem>>, %arg11: memref<8x16x8xf32, #tpu.memory_space<vmem>>) attributes {dimension_semantics = [#tpu.dimension_semantics<parallel>, #tpu.dimension_semantics<parallel>, #tpu.dimension_semantics<arbitrary>], iteration_bounds = array<i64: 1, 1, 1>, scalar_prefetch = 0 : i64, scratch_operands = 4 : i64, tpu.core_type = #tpu.core_type<tc>, window_params = [{transform_indices = @transform_0, window_bounds = array<i64: 8, 16, 8>}, {transform_indices = @transform_1, window_bounds = array<i64: 8, 8, 8>}, {transform_indices = @transform_2, window_bounds = array<i64: 8, 8, 8>}, {pipeline_mode = #tpu.pipeline_mode<synchronous>, transform_indices = @transform_3, window_bounds = array<i64: 1, 8>}, {transform_indices = @transform_4, window_bounds = array<i64: 8, 16, 8>}]} {
    %c0_i32 = arith.constant 0 : i32
    %0 = arith.cmpi eq, %arg2, %c0_i32 : i32
    %1 = arith.extui %0 : i1 to i32
    %c0_i32_0 = arith.constant 0 : i32
    %2 = arith.cmpi ne, %1, %c0_i32_0 : i32
    scf.if %2 {
      %c0_32 = arith.constant 0 : index
      %c0_33 = arith.constant 0 : index
      %c0_34 = arith.constant 0 : index
      %32 = vector.load %arg3[%c0_32, %c0_33, %c0_34] : memref<8x16x8xf32, #tpu.memory_space<vmem>>, vector<8x16x8xf32>
      %33 = arith.mulf %32, %32 : vector<8x16x8xf32>
      %cst_35 = arith.constant dense<0.000000e+00> : vector<8x16xf32>
      %34 = vector.multi_reduction <add>, %33, %cst_35 [2] : vector<8x16x8xf32> to vector<8x16xf32>
      %35 = vector.shape_cast %34 : vector<8x16xf32> to vector<8x16x1xf32>
      %cst_36 = arith.constant 8.000000e+00 : f32
      %36 = vector.broadcast %cst_36 : f32 to vector<8x16x1xf32>
      %37 = arith.divf %35, %36 : vector<8x16x1xf32>
      %cst_37 = arith.constant 9.99999997E-7 : f32
      %38 = vector.broadcast %cst_37 : f32 to vector<8x16x1xf32>
      %39 = arith.addf %37, %38 : vector<8x16x1xf32>
      %40 = math.rsqrt %39 : vector<8x16x1xf32>
      %41 = vector.broadcast %40 : vector<8x16x1xf32> to vector<8x16x8xf32>
      %42 = arith.mulf %32, %41 : vector<8x16x8xf32>
      %c0_38 = arith.constant 0 : index
      %c0_39 = arith.constant 0 : index
      %43 = vector.load %arg6[%c0_38, %c0_39] : memref<1x8xf32, #tpu.memory_space<vmem>>, vector<1x8xf32>
      %44 = vector.shape_cast %43 : vector<1x8xf32> to vector<1x1x8xf32>
      %45 = vector.broadcast %44 : vector<1x1x8xf32> to vector<8x16x8xf32>
      %46 = arith.mulf %42, %45 : vector<8x16x8xf32>
      %cst_40 = arith.constant 0.353553385 : f32
      %47 = vector.broadcast %cst_40 : f32 to vector<8x16x8xf32>
      %48 = arith.mulf %46, %47 : vector<8x16x8xf32>
      %c0_41 = arith.constant 0 : index
      %c0_42 = arith.constant 0 : index
      %c0_43 = arith.constant 0 : index
      %49 = vector.load %arg8[%c0_41, %c0_42, %c0_43] : memref<8x16x8xf32, #tpu.memory_space<vmem>>, vector<8x16x8xf32>
      tpu.vector_store %arg8[%c0_41, %c0_42, %c0_43], %48 {strides = array<i32>} : memref<8x16x8xf32, #tpu.memory_space<vmem>>, vector<8x16x8xf32>,
      %cst_44 = arith.constant 0xFF800000 : f32
      %50 = vector.broadcast %cst_44 : f32 to vector<8x16x1xf32>
      %c0_45 = arith.constant 0 : index
      %c0_46 = arith.constant 0 : index
      %c0_47 = arith.constant 0 : index
      %51 = vector.load %arg9[%c0_45, %c0_46, %c0_47] : memref<8x16x1xf32, #tpu.memory_space<vmem>>, vector<8x16x1xf32>
      tpu.vector_store %arg9[%c0_45, %c0_46, %c0_47], %50 {strides = array<i32>} : memref<8x16x1xf32, #tpu.memory_space<vmem>>, vector<8x16x1xf32>,
      %cst_48 = arith.constant 0.000000e+00 : f32
      %52 = vector.broadcast %cst_48 : f32 to vector<8x16x1xf32>
      %c0_49 = arith.constant 0 : index
      %c0_50 = arith.constant 0 : index
      %c0_51 = arith.constant 0 : index
      %53 = vector.load %arg10[%c0_49, %c0_50, %c0_51] : memref<8x16x1xf32, #tpu.memory_space<vmem>>, vector<8x16x1xf32>
      tpu.vector_store %arg10[%c0_49, %c0_50, %c0_51], %52 {strides = array<i32>} : memref<8x16x1xf32, #tpu.memory_space<vmem>>, vector<8x16x1xf32>,
      %cst_52 = arith.constant 0.000000e+00 : f32
      %54 = vector.broadcast %cst_52 : f32 to vector<8x16x8xf32>
      %c0_53 = arith.constant 0 : index
      %c0_54 = arith.constant 0 : index
      %c0_55 = arith.constant 0 : index
      %55 = vector.load %arg11[%c0_53, %c0_54, %c0_55] : memref<8x16x8xf32, #tpu.memory_space<vmem>>, vector<8x16x8xf32>
      tpu.vector_store %arg11[%c0_53, %c0_54, %c0_55], %54 {strides = array<i32>} : memref<8x16x8xf32, #tpu.memory_space<vmem>>, vector<8x16x8xf32>,
    } else {
    }
    %c0 = arith.constant 0 : index
    %c0_1 = arith.constant 0 : index
    %c0_2 = arith.constant 0 : index
    %3 = vector.load %arg8[%c0, %c0_1, %c0_2] : memref<8x16x8xf32, #tpu.memory_space<vmem>>, vector<8x16x8xf32>
    %c0_3 = arith.constant 0 : index
    %c0_4 = arith.constant 0 : index
    %c0_5 = arith.constant 0 : index
    %4 = vector.load %arg4[%c0_3, %c0_4, %c0_5] : memref<8x8x8xf32, #tpu.memory_space<vmem>>, vector<8x8x8xf32>
    "tpu.trace_start"() <{level = 10 : i32, message = "hqd,hkd->hqk"}> : () -> ()
    %cst = arith.constant dense<0.000000e+00> : vector<8x16x8xf32>
    %5 = tpu.matmul %3, %4, %cst {dimension_numbers = #tpu.dot_dimension_numbers<[2], [2], [1], [1], [0, 0, 0, 1, 1, 1], [0], [0]>} : vector<8x16x8xf32>, vector<8x8x8xf32>, vector<8x16x8xf32> -> vector<8x16x8xf32>
    "tpu.trace_stop"() : () -> ()
    %c0_6 = arith.constant 0 : index
    %c0_7 = arith.constant 0 : index
    %c0_8 = arith.constant 0 : index
    %6 = vector.load %arg9[%c0_6, %c0_7, %c0_8] : memref<8x16x1xf32, #tpu.memory_space<vmem>>, vector<8x16x1xf32>
    %cst_9 = arith.constant dense<0xFF800000> : vector<8x16xf32>
    %7 = vector.multi_reduction <maximumf>, %5, %cst_9 [2] : vector<8x16x8xf32> to vector<8x16xf32>
    %8 = vector.shape_cast %7 : vector<8x16xf32> to vector<8x16x1xf32>
    %9 = arith.maximumf %6, %8 : vector<8x16x1xf32>
    %10 = arith.subf %6, %9 : vector<8x16x1xf32>
    %11 = math.exp %10 : vector<8x16x1xf32>
    %12 = vector.broadcast %9 : vector<8x16x1xf32> to vector<8x16x8xf32>
    %13 = arith.subf %5, %12 : vector<8x16x8xf32>
    %14 = math.exp %13 : vector<8x16x8xf32>
    %c0_10 = arith.constant 0 : index
    %c0_11 = arith.constant 0 : index
    %c0_12 = arith.constant 0 : index
    %15 = vector.load %arg10[%c0_10, %c0_11, %c0_12] : memref<8x16x1xf32, #tpu.memory_space<vmem>>, vector<8x16x1xf32>
    %16 = arith.mulf %11, %15 : vector<8x16x1xf32>
    %cst_13 = arith.constant dense<0.000000e+00> : vector<8x16xf32>
    %17 = vector.multi_reduction <add>, %14, %cst_13 [2] : vector<8x16x8xf32> to vector<8x16xf32>
    %18 = vector.shape_cast %17 : vector<8x16xf32> to vector<8x16x1xf32>
    %19 = arith.addf %16, %18 : vector<8x16x1xf32>
    %c0_14 = arith.constant 0 : index
    %c0_15 = arith.constant 0 : index
    %c0_16 = arith.constant 0 : index
    %20 = vector.load %arg10[%c0_14, %c0_15, %c0_16] : memref<8x16x1xf32, #tpu.memory_space<vmem>>, vector<8x16x1xf32>
    tpu.vector_store %arg10[%c0_14, %c0_15, %c0_16], %19 {strides = array<i32>} : memref<8x16x1xf32, #tpu.memory_space<vmem>>, vector<8x16x1xf32>,
    %c0_17 = arith.constant 0 : index
    %c0_18 = arith.constant 0 : index
    %c0_19 = arith.constant 0 : index
    %21 = vector.load %arg11[%c0_17, %c0_18, %c0_19] : memref<8x16x8xf32, #tpu.memory_space<vmem>>, vector<8x16x8xf32>
    %22 = vector.broadcast %11 : vector<8x16x1xf32> to vector<8x16x8xf32>
    %23 = arith.mulf %22, %21 : vector<8x16x8xf32>
    %c0_20 = arith.constant 0 : index
    %c0_21 = arith.constant 0 : index
    %c0_22 = arith.constant 0 : index
    %24 = vector.load %arg5[%c0_20, %c0_21, %c0_22] : memref<8x8x8xf32, #tpu.memory_space<vmem>>, vector<8x8x8xf32>
    "tpu.trace_start"() <{level = 10 : i32, message = "hqk,hkd->hqd"}> : () -> ()
    %cst_23 = arith.constant dense<0.000000e+00> : vector<8x16x8xf32>
    %25 = tpu.matmul %14, %24, %cst_23 {dimension_numbers = #tpu.dot_dimension_numbers<[2], [1], [1], [2], [0, 0, 0, 1, 1, 2], [0], [0]>} : vector<8x16x8xf32>, vector<8x8x8xf32>, vector<8x16x8xf32> -> vector<8x16x8xf32>
    "tpu.trace_stop"() : () -> ()
    %26 = arith.addf %23, %25 : vector<8x16x8xf32>
    %c0_24 = arith.constant 0 : index
    %c0_25 = arith.constant 0 : index
    %c0_26 = arith.constant 0 : index
    %27 = vector.load %arg11[%c0_24, %c0_25, %c0_26] : memref<8x16x8xf32, #tpu.memory_space<vmem>>, vector<8x16x8xf32>
    tpu.vector_store %arg11[%c0_24, %c0_25, %c0_26], %26 {strides = array<i32>} : memref<8x16x8xf32, #tpu.memory_space<vmem>>, vector<8x16x8xf32>,
    %c0_27 = arith.constant 0 : index
    %c0_28 = arith.constant 0 : index
    %c0_29 = arith.constant 0 : index
    %28 = vector.load %arg9[%c0_27, %c0_28, %c0_29] : memref<8x16x1xf32, #tpu.memory_space<vmem>>, vector<8x16x1xf32>
    tpu.vector_store %arg9[%c0_27, %c0_28, %c0_29], %9 {strides = array<i32>} : memref<8x16x1xf32, #tpu.memory_space<vmem>>, vector<8x16x1xf32>,
    %c0_i32_30 = arith.constant 0 : i32
    %29 = arith.cmpi eq, %arg2, %c0_i32_30 : i32
    %30 = arith.extui %29 : i1 to i32
    %c0_i32_31 = arith.constant 0 : i32
    %31 = arith.cmpi ne, %30, %c0_i32_31 : i32
    scf.if %31 {
      %c0_32 = arith.constant 0 : index
      %c0_33 = arith.constant 0 : index
      %c0_34 = arith.constant 0 : index
      %32 = vector.load %arg10[%c0_32, %c0_33, %c0_34] : memref<8x16x1xf32, #tpu.memory_space<vmem>>, vector<8x16x1xf32>
      %33 = tpu.reciprocal %32 {approx = true} : vector<8x16x1xf32> -> vector<8x16x1xf32>
      %c0_35 = arith.constant 0 : index
      %c0_36 = arith.constant 0 : index
      %c0_37 = arith.constant 0 : index
      %34 = vector.load %arg11[%c0_35, %c0_36, %c0_37] : memref<8x16x8xf32, #tpu.memory_space<vmem>>, vector<8x16x8xf32>
      %35 = vector.broadcast %33 : vector<8x16x1xf32> to vector<8x16x8xf32>
      %36 = arith.mulf %34, %35 : vector<8x16x8xf32>
      %c0_38 = arith.constant 0 : index
      %c0_39 = arith.constant 0 : index
      %c0_40 = arith.constant 0 : index
      %37 = vector.load %arg7[%c0_38, %c0_39, %c0_40] : memref<8x16x8xf32, #tpu.memory_space<vmem>>, vector<8x16x8xf32>
      tpu.vector_store %arg7[%c0_38, %c0_39, %c0_40], %36 {strides = array<i32>} : memref<8x16x8xf32, #tpu.memory_space<vmem>>, vector<8x16x8xf32>,
    } else {
    }
    return
  }
  func.func @transform_0(%arg0: i32, %arg1: i32, %arg2: i32) -> (i32, i32, i32) {
    %c0_i32 = arith.constant 0 : i32
    %c0_i32_0 = arith.constant 0 : i32
    return %arg0, %arg1, %c0_i32 : i32, i32, i32
  }
  func.func @transform_1(%arg0: i32, %arg1: i32, %arg2: i32) -> (i32, i32, i32) {
    %c0_i32 = arith.constant 0 : i32
    %c0_i32_0 = arith.constant 0 : i32
    return %arg0, %arg2, %c0_i32 : i32, i32, i32
  }
  func.func @transform_2(%arg0: i32, %arg1: i32, %arg2: i32) -> (i32, i32, i32) {
    %c0_i32 = arith.constant 0 : i32
    %c0_i32_0 = arith.constant 0 : i32
    return %arg0, %arg2, %c0_i32 : i32, i32, i32
  }
  func.func @transform_3(%arg0: i32, %arg1: i32, %arg2: i32) -> (i32, i32) {
    %c0_i32 = arith.constant 0 : i32
    %c0_i32_0 = arith.constant 0 : i32
    %c0_i32_1 = arith.constant 0 : i32
    return %c0_i32, %c0_i32_0 : i32, i32
  }
  func.func @transform_4(%arg0: i32, %arg1: i32, %arg2: i32) -> (i32, i32, i32) {
    %c0_i32 = arith.constant 0 : i32
    %c0_i32_0 = arith.constant 0 : i32
    return %arg0, %arg1, %c0_i32 : i32, i32, i32
  }
}

module attributes {stable_mosaic.version = 11 : i64} {
  func.func @_linear_kernel(%arg0: i32, %arg1: i32, %arg2: i32, %arg3: memref<32x32xf32, #tpu.memory_space<vmem>>, %arg4: memref<32x32xf32, #tpu.memory_space<vmem>>, %arg5: memref<1x32xf32, #tpu.memory_space<vmem>>, %arg6: memref<32x32xf32, #tpu.memory_space<vmem>>, %arg7: memref<32x32xf32, #tpu.memory_space<vmem>>) attributes {dimension_semantics = [#tpu.dimension_semantics<parallel>, #tpu.dimension_semantics<parallel>, #tpu.dimension_semantics<arbitrary>], iteration_bounds = array<i64: 1, 1, 1>, scalar_prefetch = 0 : i64, scratch_operands = 1 : i64, tpu.core_type = #tpu.core_type<tc>, window_params = [{transform_indices = @transform_0, window_bounds = array<i64: 32, 32>}, {transform_indices = @transform_1, window_bounds = array<i64: 32, 32>}, {transform_indices = @transform_2, window_bounds = array<i64: 1, 32>}, {transform_indices = @transform_3, window_bounds = array<i64: 32, 32>}]} {
    %c0_i32 = arith.constant 0 : i32
    %0 = arith.cmpi eq, %arg2, %c0_i32 : i32
    %1 = arith.extui %0 : i1 to i32
    %c0_i32_0 = arith.constant 0 : i32
    %2 = arith.cmpi ne, %1, %c0_i32_0 : i32
    scf.if %2 {
      %cst_10 = arith.constant 0.000000e+00 : f32
      %12 = vector.broadcast %cst_10 : f32 to vector<32x32xf32>
      %c0_11 = arith.constant 0 : index
      %c0_12 = arith.constant 0 : index
      %13 = vector.load %arg7[%c0_11, %c0_12] : memref<32x32xf32, #tpu.memory_space<vmem>>, vector<32x32xf32>
      tpu.vector_store %arg7[%c0_11, %c0_12], %12 {strides = array<i32>} : memref<32x32xf32, #tpu.memory_space<vmem>>, vector<32x32xf32>,
    } else {
    }
    %c0 = arith.constant 0 : index
    %c0_1 = arith.constant 0 : index
    %3 = vector.load %arg7[%c0, %c0_1] : memref<32x32xf32, #tpu.memory_space<vmem>>, vector<32x32xf32>
    %c0_2 = arith.constant 0 : index
    %c0_3 = arith.constant 0 : index
    %4 = vector.load %arg3[%c0_2, %c0_3] : memref<32x32xf32, #tpu.memory_space<vmem>>, vector<32x32xf32>
    %c0_4 = arith.constant 0 : index
    %c0_5 = arith.constant 0 : index
    %5 = vector.load %arg4[%c0_4, %c0_5] : memref<32x32xf32, #tpu.memory_space<vmem>>, vector<32x32xf32>
    %cst = arith.constant dense<0.000000e+00> : vector<32x32xf32>
    %6 = tpu.matmul %4, %5, %cst {dimension_numbers = #tpu.dot_dimension_numbers<[1], [0], [0], [1], [0, 0, 1, 1], [], []>} : vector<32x32xf32>, vector<32x32xf32>, vector<32x32xf32> -> vector<32x32xf32>
    %7 = arith.addf %3, %6 : vector<32x32xf32>
    %c0_6 = arith.constant 0 : index
    %c0_7 = arith.constant 0 : index
    %8 = vector.load %arg7[%c0_6, %c0_7] : memref<32x32xf32, #tpu.memory_space<vmem>>, vector<32x32xf32>
    tpu.vector_store %arg7[%c0_6, %c0_7], %7 {strides = array<i32>} : memref<32x32xf32, #tpu.memory_space<vmem>>, vector<32x32xf32>,
    %c0_i32_8 = arith.constant 0 : i32
    %9 = arith.cmpi eq, %arg2, %c0_i32_8 : i32
    %10 = arith.extui %9 : i1 to i32
    %c0_i32_9 = arith.constant 0 : i32
    %11 = arith.cmpi ne, %10, %c0_i32_9 : i32
    scf.if %11 {
      %c0_10 = arith.constant 0 : index
      %c0_11 = arith.constant 0 : index
      %12 = vector.load %arg7[%c0_10, %c0_11] : memref<32x32xf32, #tpu.memory_space<vmem>>, vector<32x32xf32>
      %c0_12 = arith.constant 0 : index
      %c0_13 = arith.constant 0 : index
      %13 = vector.load %arg5[%c0_12, %c0_13] : memref<1x32xf32, #tpu.memory_space<vmem>>, vector<1x32xf32>
      %14 = vector.broadcast %13 : vector<1x32xf32> to vector<32x32xf32>
      %15 = arith.addf %12, %14 : vector<32x32xf32>
      %c0_14 = arith.constant 0 : index
      %c0_15 = arith.constant 0 : index
      %16 = vector.load %arg6[%c0_14, %c0_15] : memref<32x32xf32, #tpu.memory_space<vmem>>, vector<32x32xf32>
      tpu.vector_store %arg6[%c0_14, %c0_15], %15 {strides = array<i32>} : memref<32x32xf32, #tpu.memory_space<vmem>>, vector<32x32xf32>,
    } else {
    }
    return
  }
  func.func @transform_0(%arg0: i32, %arg1: i32, %arg2: i32) -> (i32, i32) {
    %c0_i32 = arith.constant 0 : i32
    return %arg0, %arg2 : i32, i32
  }
  func.func @transform_1(%arg0: i32, %arg1: i32, %arg2: i32) -> (i32, i32) {
    %c0_i32 = arith.constant 0 : i32
    return %arg2, %arg1 : i32, i32
  }
  func.func @transform_2(%arg0: i32, %arg1: i32, %arg2: i32) -> (i32, i32) {
    %c0_i32 = arith.constant 0 : i32
    %c0_i32_0 = arith.constant 0 : i32
    return %c0_i32, %arg1 : i32, i32
  }
  func.func @transform_3(%arg0: i32, %arg1: i32, %arg2: i32) -> (i32, i32) {
    %c0_i32 = arith.constant 0 : i32
    return %arg0, %arg1 : i32, i32
  }
}

</mosaic_0001>

<llo_original>
// kernel: cross_attention_forward.5
$region0: #{cross_attention_forward.5}
  #allocation0 [shape = 'u32[]', space=smem, size = 0x4, offset = 0x4, fixed_abs, tag = 'smem constant byte address 0x4 - core index']
  #allocation1 [shape = 'u32[72,128]{1,0:T(1,128)}', space=vmem, size = 0x9000, scoped, tag = 'internal scratch']
  #allocation2 [shape = 'f32[32,32]{1,0:T(8,128)}', space=vmem, size = 0x4000, scoped, tag = 'scratch operand']
  %s0 = inlined_call_operand.vmem [shape: f32[32,32], index: 0, kind: input, shape index: {}]
  %s1 = inlined_call_operand.vmem [shape: f32[32,32], index: 1, kind: input, shape index: {}]
  %s2 = inlined_call_operand.vmem [shape: f32[1,32], index: 2, kind: input, shape index: {}]
  %s3 = inlined_call_operand.vmem [shape: f32[32,32], index: 3, kind: output, shape index: {}]
  %s4 = sld [smem:[#allocation0]]
  $region30: #{cross_attention_forward.5} parent=0
    _
  %s6 = ssub.s32 1, %s4
  %s7 = scalar_select 0, %s6, %s4
  // Predicated region
  $region2: #{cross_attention_forward.5} parent=0 // pred_check
    _
  $region3: #{cross_attention_forward.5} parent=0 // pred_check_branch
    %9 = sbr.rel (0) target = $region5
  $region4: #{cross_attention_forward.5} parent=0 // pred_region
    _
  $region5: #{cross_attention_forward.5} parent=0 // pred_fallthru
    _
  // Predicated region
  $region6: #{cross_attention_forward.5} parent=0 // pred_check
    _
  $region7: #{cross_attention_forward.5} parent=0 // pred_check_branch
    %11 = sbr.rel (0) target = $region9
  $region8: #{cross_attention_forward.5} parent=0 // pred_region
    _
  $region9: #{cross_attention_forward.5} parent=0 // pred_fallthru
    _
  // Predicated region
  $region10: #{cross_attention_forward.5} parent=0 // pred_check
    _
  $region11: #{cross_attention_forward.5} parent=0 // pred_check_branch
    %13 = sbr.rel (0) target = $region13
  $region12: #{cross_attention_forward.5} parent=0 // pred_region
    _
  $region13: #{cross_attention_forward.5} parent=0 // pred_fallthru
    _
  %p14 = scmp.eq.s32.totalorder 0, 0
  // Predicated region
  $region14: #{cross_attention_forward.5} parent=0 // pred_check
    %p15 = pneg %p14
  $region15: #{cross_attention_forward.5} parent=0 // pred_check_branch
    %17 = sbr.rel (%p15) target = $region17
  $region16: #{cross_attention_forward.5} parent=0 // pred_region
    %vm18 = vcmask 261120
    %19 = vst.msk [vmem:[#allocation2] sm:$0xff] %vm18, 0.0
    %20 = vst.msk [vmem:[#allocation2 + $0x8] sm:$0xff] %vm18, 0.0
    %21 = vst.msk [vmem:[#allocation2 + $0x10] sm:$0xff] %vm18, 0.0
    %22 = vst.msk [vmem:[#allocation2 + $0x18] sm:$0xff] %vm18, 0.0
  $region17: #{cross_attention_forward.5} parent=0 // pred_fallthru
    _
  %v23 = vld [vmem:[#allocation2] sm:$0xff]
  %v24 = vld [vmem:[#allocation2 + $0x8] sm:$0xff]
  %v25 = vld [vmem:[#allocation2 + $0x10] sm:$0xff]
  %v26 = vld [vmem:[#allocation2 + $0x18] sm:$0xff]
  %v27 = vld [vmem:[%s0] sm:$0xff]
  %v28 = vld [vmem:[%s0 + $0x8] sm:$0xff]
  %v29 = vld [vmem:[%s0 + $0x10] sm:$0xff]
  %v30 = vld [vmem:[%s0 + $0x18] sm:$0xff]
  %v31 = vld [vmem:[%s1] sm:$0xff]
  %v32 = vld [vmem:[%s1 + $0x8] sm:$0xff]
  %v33 = vld [vmem:[%s1 + $0x10] sm:$0xff]
  %v34 = vld [vmem:[%s1 + $0x18] sm:$0xff]
  %vm35 = vcmask 261120
  %v37 = vsel %vm35, %v27, 0
  %v40 = vsel %vm35, %v28, 0
  %v43 = vsel %vm35, %v29, 0
  %v46 = vsel %vm35, %v30, 0
  %48 = vmatpush.msra.mxu0 0.0
  %49 = vmatpush.msra.mxu0 0.0
  %50 = vmatpush.msra.mxu0 0.0
  %51 = vmatpush.msra.mxu0 0.0
  %52 = vmatpush.msra.mxu0 0.0
  %53 = vmatpush.msra.mxu0 0.0
  %54 = vmatpush.msra.mxu0 0.0
  %55 = vmatpush.msra.mxu0 0.0
  %56 = vmatpush.msra.mxu0 0.0
  %57 = vmatpush.msra.mxu0 0.0
  %58 = vmatpush.msra.mxu0 0.0
  %59 = vmatpush.msra.mxu0 0.0
  %60 = vmatpush.msra.mxu0 %v34
  %61 = vmatpush.msra.mxu0 %v33
  %62 = vmatpush.msra.mxu0 %v32
  %63 = vmatpush.msra.mxu0 %v31
  %64 = vmatmul.f32.gmra.mxu0 %v37
  %v65 = vpop.f32.mrf.mxu0
  %v66 = vadd.f32 0.0, %v65
  %67 = vmatmul.f32.gmra.mxu0 %v40
  %v68 = vpop.f32.mrf.mxu0
  %v69 = vadd.f32 0.0, %v68
  %70 = vmatmul.f32.gmra.mxu0 %v43
  %v71 = vpop.f32.mrf.mxu0
  %v72 = vadd.f32 0.0, %v71
  %73 = vmatmul.f32.gmra.mxu0 %v46
  %v74 = vpop.f32.mrf.mxu0
  %v75 = vadd.f32 0.0, %v74
  %76 = vdwg.mxu0
  %v77 = vadd.f32 %v23, %v66
  %v78 = vadd.f32 %v24, %v69
  %v79 = vadd.f32 %v25, %v72
  %v80 = vadd.f32 %v26, %v75
  %81 = vst.msk [vmem:[#allocation2] sm:$0xff] %vm35, %v77
  %82 = vst.msk [vmem:[#allocation2 + $0x8] sm:$0xff] %vm35, %v78
  %83 = vst.msk [vmem:[#allocation2 + $0x10] sm:$0xff] %vm35, %v79
  %84 = vst.msk [vmem:[#allocation2 + $0x18] sm:$0xff] %vm35, %v80
  // Predicated region
  $region18: #{cross_attention_forward.5} parent=0 // pred_check
    %p85 = pneg %p14
  $region19: #{cross_attention_forward.5} parent=0 // pred_check_branch
    %87 = sbr.rel (%p85) target = $region21
  $region20: #{cross_attention_forward.5} parent=0 // pred_region
    %v88 = vld [vmem:[#allocation2] sm:$0xff]
    %v89 = vld [vmem:[#allocation2 + $0x8] sm:$0xff]
    %v90 = vld [vmem:[#allocation2 + $0x10] sm:$0xff]
    %v91 = vld [vmem:[#allocation2 + $0x18] sm:$0xff]
    %v92 = vld [vmem:[%s2] sm:$0x1]
    %v94 = vperm.slane %v92, 0
    %v96 = vadd.f32 %v88, %v94
    %v97 = vadd.f32 %v89, %v94
    %v98 = vadd.f32 %v90, %v94
    %v99 = vadd.f32 %v91, %v94
    %100 = vst.msk [vmem:[%s3] sm:$0xff] %vm35, %v96
    %101 = vst.msk [vmem:[%s3 + $0x8] sm:$0xff] %vm35, %v97
    %102 = vst.msk [vmem:[%s3 + $0x10] sm:$0xff] %vm35, %v98
    %103 = vst.msk [vmem:[%s3 + $0x18] sm:$0xff] %vm35, %v99
  $region21: #{cross_attention_forward.5} parent=0 // pred_fallthru
    _
  // Predicated region
  $region22: #{cross_attention_forward.5} parent=0 // pred_check
    _
  $region23: #{cross_attention_forward.5} parent=0 // pred_check_branch
    %105 = sbr.rel (0) target = $region25
  $region24: #{cross_attention_forward.5} parent=0 // pred_region
    _
  $region25: #{cross_attention_forward.5} parent=0 // pred_fallthru
    _
  // Predicated region
  $region26: #{cross_attention_forward.5} parent=0 // pred_check
    _
  $region27: #{cross_attention_forward.5} parent=0 // pred_check_branch
    %107 = sbr.rel (0) target = $region29
  $region28: #{cross_attention_forward.5} parent=0 // pred_region
    _
  $region29: #{cross_attention_forward.5} parent=0 // pred_fallthru
    _

// kernel: cross_attention_forward.6
$region0: #{cross_attention_forward.6}
  #allocation0 [shape = 'u32[]', space=smem, size = 0x4, offset = 0x4, fixed_abs, tag = 'smem constant byte address 0x4 - core index']
  #allocation1 [shape = 'u32[72,128]{1,0:T(1,128)}', space=vmem, size = 0x9000, scoped, tag = 'internal scratch']
  #allocation2 [shape = 'f32[16,64]{1,0:T(8,128)}', space=vmem, size = 0x2000, scoped, tag = 'scratch operand']
  %s0 = inlined_call_operand.hbm [shape: f32[16,32], index: 0, kind: input, shape index: {}]
  %s1 = inlined_call_operand.hbm [shape: f32[32,64], index: 1, kind: input, shape index: {}]
  %s2 = inlined_call_operand.vmem [shape: f32[1,64], index: 2, kind: input, shape index: {}]
  %s3 = inlined_call_operand.vmem [shape: f32[16,64], index: 3, kind: output, shape index: {}]
  %s4 = sld [smem:[#allocation0]]
  $region38: #{cross_attention_forward.6} parent=0
    _
  %s6 = ssub.s32 1, %s4
  %s7 = scalar_select 0, %s6, %s4
  $region1: #{cross_attention_forward.6} parent=0
    #allocation3 [shape = 'u8[8192]{0}', space=vmem, size = 0x2000, scoped, tag = 'input window, operand 0, single buffered']
    #allocation4 [shape = 's32[1]{0}', space=sflag, size = 0x4, scoped, tag = 'scoped memory for cross_attention_forward.6']
    #allocation5 [shape = 'u8[16384]{0}', space=vmem, size = 0x4000, scoped, tag = 'input window, operand 1, single buffered']
    #allocation6 [shape = 's32[1]{0}', space=sflag, size = 0x4, scoped, tag = 'scoped memory for cross_attention_forward.6']
    %8 = vsyncpa [#allocation4], 0
    %9 = vsyncpa [#allocation6], 0
    // Predicated region
    $region2: #{cross_attention_forward.6} parent=1 // pred_check
      _
    $region3: #{cross_attention_forward.6} parent=1 // pred_check_branch
      %11 = sbr.rel (0) target = $region5
    $region4: #{cross_attention_forward.6} parent=1 // pred_region
      %13 = vsyncadd [#allocation4], 0
      %s14 = sshll.u32 %s0, 4
      %s15 = int_to_ptr.hbm [resolvable:$true] %s14
      %s16 = sshll.u32 [#allocation3], 4
      %s17 = int_to_ptr.vmem [resolvable:$true] %s16
      %22 = dma.hbm_to_vmem [thread:$0]  %s15, 256, %s17, [#allocation4], 128, 128, 8
    $region5: #{cross_attention_forward.6} parent=1 // pred_fallthru
      _
    // Predicated region
    $region6: #{cross_attention_forward.6} parent=1 // pred_check
      _
    $region7: #{cross_attention_forward.6} parent=1 // pred_check_branch
      %24 = sbr.rel (0) target = $region9
    $region8: #{cross_attention_forward.6} parent=1 // pred_region
      %26 = vsyncadd [#allocation6], 0
      %s27 = sshll.u32 %s1, 4
      %s28 = int_to_ptr.hbm [resolvable:$true] %s27
      %s29 = sshll.u32 [#allocation5], 4
      %s30 = int_to_ptr.vmem [resolvable:$true] %s29
      %35 = dma.hbm_to_vmem [thread:$0]  %s28, 512, %s30, [#allocation6], 128, 128, 8
    $region9: #{cross_attention_forward.6} parent=1 // pred_fallthru
      _
    // Predicated region
    $region10: #{cross_attention_forward.6} parent=1 // pred_check
      _
    $region11: #{cross_attention_forward.6} parent=1 // pred_check_branch
      %37 = sbr.rel (0) target = $region13
    $region12: #{cross_attention_forward.6} parent=1 // pred_region
      _
    $region13: #{cross_attention_forward.6} parent=1 // pred_fallthru
      _
    // Predicated region
    $region14: #{cross_attention_forward.6} parent=1 // pred_check
      _
    $region15: #{cross_attention_forward.6} parent=1 // pred_check_branch
      %39 = sbr.rel (0) target = $region17
    $region16: #{cross_attention_forward.6} parent=1 // pred_region
      %41 = dma.done [#allocation4], 256
    $region17: #{cross_attention_forward.6} parent=1 // pred_fallthru
      _
    // Predicated region
    $region18: #{cross_attention_forward.6} parent=1 // pred_check
      _
    $region19: #{cross_attention_forward.6} parent=1 // pred_check_branch
      %43 = sbr.rel (0) target = $region21
    $region20: #{cross_attention_forward.6} parent=1 // pred_region
      %45 = dma.done [#allocation6], 512
    $region21: #{cross_attention_forward.6} parent=1 // pred_fallthru
      _
    %p46 = scmp.eq.s32.totalorder 0, 0
    // Predicated region
    $region22: #{cross_attention_forward.6} parent=1 // pred_check
      %p47 = pneg %p46
    $region23: #{cross_attention_forward.6} parent=1 // pred_check_branch
      %49 = sbr.rel (%p47) target = $region25
    $region24: #{cross_attention_forward.6} parent=1 // pred_region
      %vm50 = vcmask 523264
      %51 = vst.msk [vmem:[#allocation2] sm:$0xff] %vm50, 0.0
      %52 = vst.msk [vmem:[#allocation2 + $0x8] sm:$0xff] %vm50, 0.0
    $region25: #{cross_attention_forward.6} parent=1 // pred_fallthru
      _
    %v53 = vld [vmem:[#allocation2] sm:$0xff]
    %v54 = vld [vmem:[#allocation2 + $0x8] sm:$0xff]
    %v55 = vld [vmem:[#allocation3] sm:$0xff]
    %v56 = vld [vmem:[#allocation3 + $0x8] sm:$0xff]
    %v57 = vld [vmem:[#allocation5] sm:$0xff]
    %v58 = vld [vmem:[#allocation5 + $0x8] sm:$0xff]
    %v59 = vld [vmem:[#allocation5 + $0x10] sm:$0xff]
    %v60 = vld [vmem:[#allocation5 + $0x18] sm:$0xff]
    %vm61 = vcmask 261120
    %v63 = vsel %vm61, %v55, 0
    %v66 = vsel %vm61, %v56, 0
    %68 = vmatpush.msra.mxu0 0.0
    %69 = vmatpush.msra.mxu0 0.0
    %70 = vmatpush.msra.mxu0 0.0
    %71 = vmatpush.msra.mxu0 0.0
    %72 = vmatpush.msra.mxu0 0.0
    %73 = vmatpush.msra.mxu0 0.0
    %74 = vmatpush.msra.mxu0 0.0
    %75 = vmatpush.msra.mxu0 0.0
    %76 = vmatpush.msra.mxu0 0.0
    %77 = vmatpush.msra.mxu0 0.0
    %78 = vmatpush.msra.mxu0 0.0
    %79 = vmatpush.msra.mxu0 0.0
    %80 = vmatpush.msra.mxu0 %v60
    %81 = vmatpush.msra.mxu0 %v59
    %82 = vmatpush.msra.mxu0 %v58
    %83 = vmatpush.msra.mxu0 %v57
    %84 = vmatmul.f32.gmra.mxu0 %v63
    %v85 = vpop.f32.mrf.mxu0
    %v86 = vadd.f32 0.0, %v85
    %87 = vmatmul.f32.gmra.mxu0 %v66
    %v88 = vpop.f32.mrf.mxu0
    %v89 = vadd.f32 0.0, %v88
    %90 = vdwg.mxu0
    %v91 = vadd.f32 %v53, %v86
    %v92 = vadd.f32 %v54, %v89
    %vm93 = vcmask 523264
    %94 = vst.msk [vmem:[#allocation2] sm:$0xff] %vm93, %v91
    %95 = vst.msk [vmem:[#allocation2 + $0x8] sm:$0xff] %vm93, %v92
    // Predicated region
    $region26: #{cross_attention_forward.6} parent=1 // pred_check
      %p96 = pneg %p46
    $region27: #{cross_attention_forward.6} parent=1 // pred_check_branch
      %98 = sbr.rel (%p96) target = $region29
    $region28: #{cross_attention_forward.6} parent=1 // pred_region
      %v99 = vld [vmem:[#allocation2] sm:$0xff]
      %v100 = vld [vmem:[#allocation2 + $0x8] sm:$0xff]
      %v101 = vld [vmem:[%s2] sm:$0x1]
      %v103 = vperm.slane %v101, 0
      %v105 = vadd.f32 %v99, %v103
      %v106 = vadd.f32 %v100, %v103
      %107 = vst.msk [vmem:[%s3] sm:$0xff] %vm93, %v105
      %108 = vst.msk [vmem:[%s3 + $0x8] sm:$0xff] %vm93, %v106
    $region29: #{cross_attention_forward.6} parent=1 // pred_fallthru
      _
    // Predicated region
    $region30: #{cross_attention_forward.6} parent=1 // pred_check
      _
    $region31: #{cross_attention_forward.6} parent=1 // pred_check_branch
      %110 = sbr.rel (0) target = $region33
    $region32: #{cross_attention_forward.6} parent=1 // pred_region
      _
    $region33: #{cross_attention_forward.6} parent=1 // pred_fallthru
      _
    // Predicated region
    $region34: #{cross_attention_forward.6} parent=1 // pred_check
      _
    $region35: #{cross_attention_forward.6} parent=1 // pred_check_branch
      %112 = sbr.rel (0) target = $region37
    $region36: #{cross_attention_forward.6} parent=1 // pred_region
      _
    $region37: #{cross_attention_forward.6} parent=1 // pred_fallthru
      _
    %113 = vsyncpa [#allocation4], 1
    %114 = vsyncpa [#allocation6], 1

// kernel: cross_attention_forward.7
$region0: #{cross_attention_forward.7}
  #allocation0 [shape = 'u32[]', space=smem, size = 0x4, offset = 0x4, fixed_abs, tag = 'smem constant byte address 0x4 - core index']
  #allocation1 [shape = 'u32[72,128]{1,0:T(1,128)}', space=vmem, size = 0x9000, scoped, tag = 'internal scratch']
  %s0 = inlined_call_operand.vmem [shape: f32[8,8,8], index: 0, kind: input, shape index: {}]
  %s1 = inlined_call_operand.vmem [shape: f32[1,8], index: 1, kind: input, shape index: {}]
  %s2 = inlined_call_operand.vmem [shape: f32[8,8,8], index: 2, kind: output, shape index: {}]
  %s3 = sld [smem:[#allocation0]]
  $region18: #{cross_attention_forward.7} parent=0
    _
  %s5 = ssub.s32 1, %s3
  %s6 = scalar_select 0, %s5, %s3
  // Predicated region
  $region2: #{cross_attention_forward.7} parent=0 // pred_check
    _
  $region3: #{cross_attention_forward.7} parent=0 // pred_check_branch
    %8 = sbr.rel (0) target = $region5
  $region4: #{cross_attention_forward.7} parent=0 // pred_region
    _
  $region5: #{cross_attention_forward.7} parent=0 // pred_fallthru
    _
  // Predicated region
  $region6: #{cross_attention_forward.7} parent=0 // pred_check
    _
  $region7: #{cross_attention_forward.7} parent=0 // pred_check_branch
    %10 = sbr.rel (0) target = $region9
  $region8: #{cross_attention_forward.7} parent=0 // pred_region
    _
  $region9: #{cross_attention_forward.7} parent=0 // pred_fallthru
    _
  %v11 = vld [vmem:[%s0] sm:$0xff]
  %v12 = vld [vmem:[%s0 + $0x8] sm:$0xff]
  %v13 = vld [vmem:[%s0 + $0x10] sm:$0xff]
  %v14 = vld [vmem:[%s0 + $0x18] sm:$0xff]
  %v15 = vld [vmem:[%s0 + $0x20] sm:$0xff]
  %v16 = vld [vmem:[%s0 + $0x28] sm:$0xff]
  %v17 = vld [vmem:[%s0 + $0x30] sm:$0xff]
  %v18 = vld [vmem:[%s0 + $0x38] sm:$0xff]
  %v19 = vmul.f32 %v11, %v11
  %v20 = vmul.f32 %v12, %v12
  %v21 = vmul.f32 %v13, %v13
  %v22 = vmul.f32 %v14, %v14
  %v23 = vmul.f32 %v15, %v15
  %v24 = vmul.f32 %v16, %v16
  %v25 = vmul.f32 %v17, %v17
  %v26 = vmul.f32 %v18, %v18
  %vm27 = vcmask 64512
  %v28 = vsel %vm27, %v19, 0.0
  %29 = vadd.xlane.f32.xlu0 %v28
  %v30 = vpop.xlane.xlu0 %29
  %v31 = vsel %vm27, %v20, 0.0
  %32 = vadd.xlane.f32.xlu0 %v31
  %v33 = vpop.xlane.xlu0 %32
  %v34 = vsel %vm27, %v21, 0.0
  %35 = vadd.xlane.f32.xlu0 %v34
  %v36 = vpop.xlane.xlu0 %35
  %v37 = vsel %vm27, %v22, 0.0
  %38 = vadd.xlane.f32.xlu0 %v37
  %v39 = vpop.xlane.xlu0 %38
  %v40 = vsel %vm27, %v23, 0.0
  %41 = vadd.xlane.f32.xlu0 %v40
  %v42 = vpop.xlane.xlu0 %41
  %v43 = vsel %vm27, %v24, 0.0
  %44 = vadd.xlane.f32.xlu0 %v43
  %v45 = vpop.xlane.xlu0 %44
  %v46 = vsel %vm27, %v25, 0.0
  %47 = vadd.xlane.f32.xlu0 %v46
  %v48 = vpop.xlane.xlu0 %47
  %v49 = vsel %vm27, %v26, 0.0
  %50 = vadd.xlane.f32.xlu0 %v49
  %v51 = vpop.xlane.xlu0 %50
  %v52 = vrcp.pop 8.0
  %v53 = vmul.f32 8.0, %v52
  %v54 = vsub.f32 1.0, %v53
  %v55 = vmul.f32 %v52, %v54
  %v56 = vadd.f32 %v52, %v55
  %vm57 = vweird.f32 %v52
  %v58 = vsel %vm57, %v52, %v56
  %v59 = vmul.f32 %v30, %v58
  %v60 = vmul.f32 %v33, %v58
  %v61 = vmul.f32 %v36, %v58
  %v62 = vmul.f32 %v39, %v58
  %v63 = vmul.f32 %v42, %v58
  %v64 = vmul.f32 %v45, %v58
  %v65 = vmul.f32 %v48, %v58
  %v66 = vmul.f32 %v51, %v58
  %v67 = vadd.f32 %v59, 1e-06
  %v68 = vadd.f32 %v60, 1e-06
  %v69 = vadd.f32 %v61, 1e-06
  %v70 = vadd.f32 %v62, 1e-06
  %v71 = vadd.f32 %v63, 1e-06
  %v72 = vadd.f32 %v64, 1e-06
  %v73 = vadd.f32 %v65, 1e-06
  %v74 = vadd.f32 %v66, 1e-06
  %v75 = vrsqrt.pop %v67
  %v76 = vmul.f32 %v75, %v67
  %v77 = vmul.f32 %v76, %v75
  %v78 = vmul.f32 0.5, %v77
  %v79 = vsub.f32 1.5, %v78
  %v80 = vmul.f32 %v75, %v79
  %vm81 = vweird.f32 %v67
  %vm82 = vweird.f32 %v75
  %vm83 = vmor %vm81, %vm82
  %v84 = vsel %vm83, %v75, %v80
  %v85 = vrsqrt.pop %v68
  %v86 = vmul.f32 %v85, %v68
  %v87 = vmul.f32 %v86, %v85
  %v88 = vmul.f32 0.5, %v87
  %v89 = vsub.f32 1.5, %v88
  %v90 = vmul.f32 %v85, %v89
  %vm91 = vweird.f32 %v68
  %vm92 = vweird.f32 %v85
  %vm93 = vmor %vm91, %vm92
  %v94 = vsel %vm93, %v85, %v90
  %v95 = vrsqrt.pop %v69
  %v96 = vmul.f32 %v95, %v69
  %v97 = vmul.f32 %v96, %v95
  %v98 = vmul.f32 0.5, %v97
  %v99 = vsub.f32 1.5, %v98
  %v100 = vmul.f32 %v95, %v99
  %vm101 = vweird.f32 %v69
  %vm102 = vweird.f32 %v95
  %vm103 = vmor %vm101, %vm102
  %v104 = vsel %vm103, %v95, %v100
  %v105 = vrsqrt.pop %v70
  %v106 = vmul.f32 %v105, %v70
  %v107 = vmul.f32 %v106, %v105
  %v108 = vmul.f32 0.5, %v107
  %v109 = vsub.f32 1.5, %v108
  %v110 = vmul.f32 %v105, %v109
  %vm111 = vweird.f32 %v70
  %vm112 = vweird.f32 %v105
  %vm113 = vmor %vm111, %vm112
  %v114 = vsel %vm113, %v105, %v110
  %v115 = vrsqrt.pop %v71
  %v116 = vmul.f32 %v115, %v71
  %v117 = vmul.f32 %v116, %v115
  %v118 = vmul.f32 0.5, %v117
  %v119 = vsub.f32 1.5, %v118
  %v120 = vmul.f32 %v115, %v119
  %vm121 = vweird.f32 %v71
  %vm122 = vweird.f32 %v115
  %vm123 = vmor %vm121, %vm122
  %v124 = vsel %vm123, %v115, %v120
  %v125 = vrsqrt.pop %v72
  %v126 = vmul.f32 %v125, %v72
  %v127 = vmul.f32 %v126, %v125
  %v128 = vmul.f32 0.5, %v127
  %v129 = vsub.f32 1.5, %v128
  %v130 = vmul.f32 %v125, %v129
  %vm131 = vweird.f32 %v72
  %vm132 = vweird.f32 %v125
  %vm133 = vmor %vm131, %vm132
  %v134 = vsel %vm133, %v125, %v130
  %v135 = vrsqrt.pop %v73
  %v136 = vmul.f32 %v135, %v73
  %v137 = vmul.f32 %v136, %v135
  %v138 = vmul.f32 0.5, %v137
  %v139 = vsub.f32 1.5, %v138
  %v140 = vmul.f32 %v135, %v139
  %vm141 = vweird.f32 %v73
  %vm142 = vweird.f32 %v135
  %vm143 = vmor %vm141, %vm142
  %v144 = vsel %vm143, %v135, %v140
  %v145 = vrsqrt.pop %v74
  %v146 = vmul.f32 %v145, %v74
  %v147 = vmul.f32 %v146, %v145
  %v148 = vmul.f32 0.5, %v147
  %v149 = vsub.f32 1.5, %v148
  %v150 = vmul.f32 %v145, %v149
  %vm151 = vweird.f32 %v74
  %vm152 = vweird.f32 %v145
  %vm153 = vmor %vm151, %vm152
  %v154 = vsel %vm153, %v145, %v150
  %v155 = vmul.f32 %v11, %v84
  %v156 = vmul.f32 %v12, %v94
  %v157 = vmul.f32 %v13, %v104
  %v158 = vmul.f32 %v14, %v114
  %v159 = vmul.f32 %v15, %v124
  %v160 = vmul.f32 %v16, %v134
  %v161 = vmul.f32 %v17, %v144
  %v162 = vmul.f32 %v18, %v154
  %v163 = vld [vmem:[%s1] sm:$0x1]
  %v165 = vperm.slane %v163, 0
  %v167 = vmul.f32 %v155, %v165
  %v168 = vmul.f32 %v156, %v165
  %v169 = vmul.f32 %v157, %v165
  %v170 = vmul.f32 %v158, %v165
  %v171 = vmul.f32 %v159, %v165
  %v172 = vmul.f32 %v160, %v165
  %v173 = vmul.f32 %v161, %v165
  %v174 = vmul.f32 %v162, %v165
  %175 = vst.msk [vmem:[%s2] sm:$0xff] %vm27, %v167
  %176 = vst.msk [vmem:[%s2 + $0x8] sm:$0xff] %vm27, %v168
  %177 = vst.msk [vmem:[%s2 + $0x10] sm:$0xff] %vm27, %v169
  %178 = vst.msk [vmem:[%s2 + $0x18] sm:$0xff] %vm27, %v170
  %179 = vst.msk [vmem:[%s2 + $0x20] sm:$0xff] %vm27, %v171
  %180 = vst.msk [vmem:[%s2 + $0x28] sm:$0xff] %vm27, %v172
  %181 = vst.msk [vmem:[%s2 + $0x30] sm:$0xff] %vm27, %v173
  %182 = vst.msk [vmem:[%s2 + $0x38] sm:$0xff] %vm27, %v174
  // Predicated region
  $region10: #{cross_attention_forward.7} parent=0 // pred_check
    _
  $region11: #{cross_attention_forward.7} parent=0 // pred_check_branch
    %184 = sbr.rel (0) target = $region13
  $region12: #{cross_attention_forward.7} parent=0 // pred_region
    _
  $region13: #{cross_attention_forward.7} parent=0 // pred_fallthru
    _
  // Predicated region
  $region14: #{cross_attention_forward.7} parent=0 // pred_check
    _
  $region15: #{cross_attention_forward.7} parent=0 // pred_check_branch
    %186 = sbr.rel (0) target = $region17
  $region16: #{cross_attention_forward.7} parent=0 // pred_region
    _
  $region17: #{cross_attention_forward.7} parent=0 // pred_fallthru
    _

// kernel: cross_attention_forward.9
$region0: #{cross_attention_forward.9}
  #allocation0 [shape = 'u32[]', space=smem, size = 0x4, offset = 0x4, fixed_abs, tag = 'smem constant byte address 0x4 - core index']
  #allocation1 [shape = 'u32[72,128]{1,0:T(1,128)}', space=vmem, size = 0x9000, scoped, tag = 'internal scratch']
  #allocation2 [shape = 'f32[32,32]{1,0:T(8,128)}', space=vmem, size = 0x4000, scoped, tag = 'scratch operand']
  %s0 = inlined_call_operand.vmem [shape: f32[32,32], index: 0, kind: input, shape index: {}]
  %s1 = inlined_call_operand.vmem [shape: f32[32,32], index: 1, kind: input, shape index: {}]
  %s2 = inlined_call_operand.vmem [shape: f32[1,32], index: 2, kind: input, shape index: {}]
  %s3 = inlined_call_operand.hbm [shape: f32[32,32], index: 3, kind: output, shape index: {}]
  %s4 = sld [smem:[#allocation0]]
  $region30: #{cross_attention_forward.9} parent=0
    _
  %s6 = ssub.s32 1, %s4
  %s7 = scalar_select 0, %s6, %s4
  $region1: #{cross_attention_forward.9} parent=0
    #allocation3 [shape = 'u8[16384]{0}', space=vmem, size = 0x4000, scoped, tag = 'output window, operand 0, single buffered']
    #allocation4 [shape = 's32[1]{0}', space=sflag, size = 0x4, scoped, tag = 'scoped memory for cross_attention_forward.9']
    %8 = vsyncpa [#allocation4], 0
    // Predicated region
    $region2: #{cross_attention_forward.9} parent=1 // pred_check
      _
    $region3: #{cross_attention_forward.9} parent=1 // pred_check_branch
      %10 = sbr.rel (0) target = $region5
    $region4: #{cross_attention_forward.9} parent=1 // pred_region
      _
    $region5: #{cross_attention_forward.9} parent=1 // pred_fallthru
      _
    // Predicated region
    $region6: #{cross_attention_forward.9} parent=1 // pred_check
      _
    $region7: #{cross_attention_forward.9} parent=1 // pred_check_branch
      %12 = sbr.rel (0) target = $region9
    $region8: #{cross_attention_forward.9} parent=1 // pred_region
      _
    $region9: #{cross_attention_forward.9} parent=1 // pred_fallthru
      _
    // Predicated region
    $region10: #{cross_attention_forward.9} parent=1 // pred_check
      _
    $region11: #{cross_attention_forward.9} parent=1 // pred_check_branch
      %14 = sbr.rel (0) target = $region13
    $region12: #{cross_attention_forward.9} parent=1 // pred_region
      _
    $region13: #{cross_attention_forward.9} parent=1 // pred_fallthru
      _
    %p15 = scmp.eq.s32.totalorder 0, 0
    // Predicated region
    $region14: #{cross_attention_forward.9} parent=1 // pred_check
      %p16 = pneg %p15
    $region15: #{cross_attention_forward.9} parent=1 // pred_check_branch
      %18 = sbr.rel (%p16) target = $region17
    $region16: #{cross_attention_forward.9} parent=1 // pred_region
      %vm19 = vcmask 261120
      %20 = vst.msk [vmem:[#allocation2] sm:$0xff] %vm19, 0.0
      %21 = vst.msk [vmem:[#allocation2 + $0x8] sm:$0xff] %vm19, 0.0
      %22 = vst.msk [vmem:[#allocation2 + $0x10] sm:$0xff] %vm19, 0.0
      %23 = vst.msk [vmem:[#allocation2 + $0x18] sm:$0xff] %vm19, 0.0
    $region17: #{cross_attention_forward.9} parent=1 // pred_fallthru
      _
    %v24 = vld [vmem:[#allocation2] sm:$0xff]
    %v25 = vld [vmem:[#allocation2 + $0x8] sm:$0xff]
    %v26 = vld [vmem:[#allocation2 + $0x10] sm:$0xff]
    %v27 = vld [vmem:[#allocation2 + $0x18] sm:$0xff]
    %v28 = vld [vmem:[%s0] sm:$0xff]
    %v29 = vld [vmem:[%s0 + $0x8] sm:$0xff]
    %v30 = vld [vmem:[%s0 + $0x10] sm:$0xff]
    %v31 = vld [vmem:[%s0 + $0x18] sm:$0xff]
    %v32 = vld [vmem:[%s1] sm:$0xff]
    %v33 = vld [vmem:[%s1 + $0x8] sm:$0xff]
    %v34 = vld [vmem:[%s1 + $0x10] sm:$0xff]
    %v35 = vld [vmem:[%s1 + $0x18] sm:$0xff]
    %vm36 = vcmask 261120
    %v38 = vsel %vm36, %v28, 0
    %v41 = vsel %vm36, %v29, 0
    %v44 = vsel %vm36, %v30, 0
    %v47 = vsel %vm36, %v31, 0
    %49 = vmatpush.msra.mxu0 0.0
    %50 = vmatpush.msra.mxu0 0.0
    %51 = vmatpush.msra.mxu0 0.0
    %52 = vmatpush.msra.mxu0 0.0
    %53 = vmatpush.msra.mxu0 0.0
    %54 = vmatpush.msra.mxu0 0.0
    %55 = vmatpush.msra.mxu0 0.0
    %56 = vmatpush.msra.mxu0 0.0
    %57 = vmatpush.msra.mxu0 0.0
    %58 = vmatpush.msra.mxu0 0.0
    %59 = vmatpush.msra.mxu0 0.0
    %60 = vmatpush.msra.mxu0 0.0
    %61 = vmatpush.msra.mxu0 %v35
    %62 = vmatpush.msra.mxu0 %v34
    %63 = vmatpush.msra.mxu0 %v33
    %64 = vmatpush.msra.mxu0 %v32
    %65 = vmatmul.f32.gmra.mxu0 %v38
    %v66 = vpop.f32.mrf.mxu0
    %v67 = vadd.f32 0.0, %v66
    %68 = vmatmul.f32.gmra.mxu0 %v41
    %v69 = vpop.f32.mrf.mxu0
    %v70 = vadd.f32 0.0, %v69
    %71 = vmatmul.f32.gmra.mxu0 %v44
    %v72 = vpop.f32.mrf.mxu0
    %v73 = vadd.f32 0.0, %v72
    %74 = vmatmul.f32.gmra.mxu0 %v47
    %v75 = vpop.f32.mrf.mxu0
    %v76 = vadd.f32 0.0, %v75
    %77 = vdwg.mxu0
    %v78 = vadd.f32 %v24, %v67
    %v79 = vadd.f32 %v25, %v70
    %v80 = vadd.f32 %v26, %v73
    %v81 = vadd.f32 %v27, %v76
    %82 = vst.msk [vmem:[#allocation2] sm:$0xff] %vm36, %v78
    %83 = vst.msk [vmem:[#allocation2 + $0x8] sm:$0xff] %vm36, %v79
    %84 = vst.msk [vmem:[#allocation2 + $0x10] sm:$0xff] %vm36, %v80
    %85 = vst.msk [vmem:[#allocation2 + $0x18] sm:$0xff] %vm36, %v81
    // Predicated region
    $region18: #{cross_attention_forward.9} parent=1 // pred_check
      %p86 = pneg %p15
    $region19: #{cross_attention_forward.9} parent=1 // pred_check_branch
      %88 = sbr.rel (%p86) target = $region21
    $region20: #{cross_attention_forward.9} parent=1 // pred_region
      %v89 = vld [vmem:[#allocation2] sm:$0xff]
      %v90 = vld [vmem:[#allocation2 + $0x8] sm:$0xff]
      %v91 = vld [vmem:[#allocation2 + $0x10] sm:$0xff]
      %v92 = vld [vmem:[#allocation2 + $0x18] sm:$0xff]
      %v93 = vld [vmem:[%s2] sm:$0x1]
      %v95 = vperm.slane %v93, 0
      %v97 = vadd.f32 %v89, %v95
      %v98 = vadd.f32 %v90, %v95
      %v99 = vadd.f32 %v91, %v95
      %v100 = vadd.f32 %v92, %v95
      %101 = vst.msk [vmem:[#allocation3] sm:$0xff] %vm36, %v97
      %102 = vst.msk [vmem:[#allocation3 + $0x8] sm:$0xff] %vm36, %v98
      %103 = vst.msk [vmem:[#allocation3 + $0x10] sm:$0xff] %vm36, %v99
      %104 = vst.msk [vmem:[#allocation3 + $0x18] sm:$0xff] %vm36, %v100
    $region21: #{cross_attention_forward.9} parent=1 // pred_fallthru
      _
    // Predicated region
    $region22: #{cross_attention_forward.9} parent=1 // pred_check
      _
    $region23: #{cross_attention_forward.9} parent=1 // pred_check_branch
      %106 = sbr.rel (0) target = $region25
    $region24: #{cross_attention_forward.9} parent=1 // pred_region
      %108 = vsyncadd [#allocation4], 0
      %s109 = sshll.u32 [#allocation3], 4
      %s110 = int_to_ptr.vmem [resolvable:$true] %s109
      %s111 = sshll.u32 %s3, 4
      %s112 = int_to_ptr.hbm [resolvable:$true] %s111
      %117 = dma.vmem_to_hbm [thread:$0]  %s110, 512, %s112, [#allocation4], 128, 128, 8
    $region25: #{cross_attention_forward.9} parent=1 // pred_fallthru
      _
    // Predicated region
    $region26: #{cross_attention_forward.9} parent=1 // pred_check
      _
    $region27: #{cross_attention_forward.9} parent=1 // pred_check_branch
      %119 = sbr.rel (0) target = $region29
    $region28: #{cross_attention_forward.9} parent=1 // pred_region
      %121 = dma.done [#allocation4], 512
    $region29: #{cross_attention_forward.9} parent=1 // pred_fallthru
      _
    %122 = vsyncpa [#allocation4], 1

// kernel: cross_attention_forward.8
$region0: #{cross_attention_forward.8}
  #allocation0 [shape = 'u32[]', space=smem, size = 0x4, offset = 0x4, fixed_abs, tag = 'smem constant byte address 0x4 - core index']
  #allocation1 [shape = 'u32[72,128]{1,0:T(1,128)}', space=vmem, size = 0x9000, scoped, tag = 'internal scratch']
  #allocation2 [shape = 'f32[8,16,8]{2,1,0:T(8,128)}', space=vmem, size = 0x10000, scoped, tag = 'scratch operand']
  #allocation3 [shape = 'f32[8,16,1]{2,1,0:T(8,128)}', space=vmem, size = 0x10000, scoped, tag = 'scratch operand']
  #allocation4 [shape = 'f32[8,16,1]{2,1,0:T(8,128)}', space=vmem, size = 0x10000, scoped, tag = 'scratch operand']
  #allocation5 [shape = 'f32[8,16,8]{2,1,0:T(8,128)}', space=vmem, size = 0x10000, scoped, tag = 'scratch operand']
  %s0 = inlined_call_operand.vmem [shape: f32[8,16,8], index: 0, kind: input, shape index: {}]
  %s1 = inlined_call_operand.vmem [shape: f32[8,8,8], index: 1, kind: input, shape index: {}]
  %s2 = inlined_call_operand.vmem [shape: f32[8,8,8], index: 2, kind: input, shape index: {}]
  %s3 = inlined_call_operand.vmem [shape: f32[1,8], index: 3, kind: input, shape index: {}]
  %s4 = inlined_call_operand.vmem [shape: f32[8,16,8], index: 4, kind: output, shape index: {}]
  %s5 = sld [smem:[#allocation0]]
  $region34: #{cross_attention_forward.8} parent=0
    _
  %s7 = ssub.s32 1, %s5
  %s8 = scalar_select 0, %s7, %s5
  // Predicated region
  $region2: #{cross_attention_forward.8} parent=0 // pred_check
    _
  $region3: #{cross_attention_forward.8} parent=0 // pred_check_branch
    %10 = sbr.rel (0) target = $region5
  $region4: #{cross_attention_forward.8} parent=0 // pred_region
    _
  $region5: #{cross_attention_forward.8} parent=0 // pred_fallthru
    _
  // Predicated region
  $region6: #{cross_attention_forward.8} parent=0 // pred_check
    _
  $region7: #{cross_attention_forward.8} parent=0 // pred_check_branch
    %12 = sbr.rel (0) target = $region9
  $region8: #{cross_attention_forward.8} parent=0 // pred_region
    _
  $region9: #{cross_attention_forward.8} parent=0 // pred_fallthru
    _
  // Predicated region
  $region10: #{cross_attention_forward.8} parent=0 // pred_check
    _
  $region11: #{cross_attention_forward.8} parent=0 // pred_check_branch
    %14 = sbr.rel (0) target = $region13
  $region12: #{cross_attention_forward.8} parent=0 // pred_region
    _
  $region13: #{cross_attention_forward.8} parent=0 // pred_fallthru
    _
  // Predicated region
  $region14: #{cross_attention_forward.8} parent=0 // pred_check
    _
  $region15: #{cross_attention_forward.8} parent=0 // pred_check_branch
    %16 = sbr.rel (0) target = $region17
  $region16: #{cross_attention_forward.8} parent=0 // pred_region
    _
  $region17: #{cross_attention_forward.8} parent=0 // pred_fallthru
    _
  %p17 = scmp.eq.s32.totalorder 0, 0
  // Predicated region
  $region18: #{cross_attention_forward.8} parent=0 // pred_check
    %p18 = pneg %p17
  $region19: #{cross_attention_forward.8} parent=0 // pred_check_branch
    %20 = sbr.rel (%p18) target = $region21
  $region20: #{cross_attention_forward.8} parent=0 // pred_region
    %v21 = vld [vmem:[%s0] sm:$0xff]
    %v22 = vld [vmem:[%s0 + $0x8] sm:$0xff]
    %v23 = vld [vmem:[%s0 + $0x10] sm:$0xff]
    %v24 = vld [vmem:[%s0 + $0x18] sm:$0xff]
    %v25 = vld [vmem:[%s0 + $0x20] sm:$0xff]
    %v26 = vld [vmem:[%s0 + $0x28] sm:$0xff]
    %v27 = vld [vmem:[%s0 + $0x30] sm:$0xff]
    %v28 = vld [vmem:[%s0 + $0x38] sm:$0xff]
    %v29 = vld [vmem:[%s0 + $0x40] sm:$0xff]
    %v30 = vld [vmem:[%s0 + $0x48] sm:$0xff]
    %v31 = vld [vmem:[%s0 + $0x50] sm:$0xff]
    %v32 = vld [vmem:[%s0 + $0x58] sm:$0xff]
    %v33 = vld [vmem:[%s0 + $0x60] sm:$0xff]
    %v34 = vld [vmem:[%s0 + $0x68] sm:$0xff]
    %v35 = vld [vmem:[%s0 + $0x70] sm:$0xff]
    %v36 = vld [vmem:[%s0 + $0x78] sm:$0xff]
    %v37 = vmul.f32 %v21, %v21
    %v38 = vmul.f32 %v22, %v22
    %v39 = vmul.f32 %v23, %v23
    %v40 = vmul.f32 %v24, %v24
    %v41 = vmul.f32 %v25, %v25
    %v42 = vmul.f32 %v26, %v26
    %v43 = vmul.f32 %v27, %v27
    %v44 = vmul.f32 %v28, %v28
    %v45 = vmul.f32 %v29, %v29
    %v46 = vmul.f32 %v30, %v30
    %v47 = vmul.f32 %v31, %v31
    %v48 = vmul.f32 %v32, %v32
    %v49 = vmul.f32 %v33, %v33
    %v50 = vmul.f32 %v34, %v34
    %v51 = vmul.f32 %v35, %v35
    %v52 = vmul.f32 %v36, %v36
    %vm53 = vcmask 64512
    %v54 = vsel %vm53, %v37, 0.0
    %55 = vadd.xlane.f32.xlu0 %v54
    %v56 = vpop.xlane.xlu0 %55
    %v57 = vsel %vm53, %v38, 0.0
    %58 = vadd.xlane.f32.xlu0 %v57
    %v59 = vpop.xlane.xlu0 %58
    %v60 = vsel %vm53, %v39, 0.0
    %61 = vadd.xlane.f32.xlu0 %v60
    %v62 = vpop.xlane.xlu0 %61
    %v63 = vsel %vm53, %v40, 0.0
    %64 = vadd.xlane.f32.xlu0 %v63
    %v65 = vpop.xlane.xlu0 %64
    %v66 = vsel %vm53, %v41, 0.0
    %67 = vadd.xlane.f32.xlu0 %v66
    %v68 = vpop.xlane.xlu0 %67
    %v69 = vsel %vm53, %v42, 0.0
    %70 = vadd.xlane.f32.xlu0 %v69
    %v71 = vpop.xlane.xlu0 %70
    %v72 = vsel %vm53, %v43, 0.0
    %73 = vadd.xlane.f32.xlu0 %v72
    %v74 = vpop.xlane.xlu0 %73
    %v75 = vsel %vm53, %v44, 0.0
    %76 = vadd.xlane.f32.xlu0 %v75
    %v77 = vpop.xlane.xlu0 %76
    %v78 = vsel %vm53, %v45, 0.0
    %79 = vadd.xlane.f32.xlu0 %v78
    %v80 = vpop.xlane.xlu0 %79
    %v81 = vsel %vm53, %v46, 0.0
    %82 = vadd.xlane.f32.xlu0 %v81
    %v83 = vpop.xlane.xlu0 %82
    %v84 = vsel %vm53, %v47, 0.0
    %85 = vadd.xlane.f32.xlu0 %v84
    %v86 = vpop.xlane.xlu0 %85
    %v87 = vsel %vm53, %v48, 0.0
    %88 = vadd.xlane.f32.xlu0 %v87
    %v89 = vpop.xlane.xlu0 %88
    %v90 = vsel %vm53, %v49, 0.0
    %91 = vadd.xlane.f32.xlu0 %v90
    %v92 = vpop.xlane.xlu0 %91
    %v93 = vsel %vm53, %v50, 0.0
    %94 = vadd.xlane.f32.xlu0 %v93
    %v95 = vpop.xlane.xlu0 %94
    %v96 = vsel %vm53, %v51, 0.0
    %97 = vadd.xlane.f32.xlu0 %v96
    %v98 = vpop.xlane.xlu0 %97
    %v99 = vsel %vm53, %v52, 0.0
    %100 = vadd.xlane.f32.xlu0 %v99
    %v101 = vpop.xlane.xlu0 %100
    %v102 = vrcp.pop 8.0
    %v103 = vmul.f32 8.0, %v102
    %v104 = vsub.f32 1.0, %v103
    %v105 = vmul.f32 %v102, %v104
    %v106 = vadd.f32 %v102, %v105
    %vm107 = vweird.f32 %v102
    %v108 = vsel %vm107, %v102, %v106
    %v109 = vmul.f32 %v56, %v108
    %v110 = vmul.f32 %v59, %v108
    %v111 = vmul.f32 %v62, %v108
    %v112 = vmul.f32 %v65, %v108
    %v113 = vmul.f32 %v68, %v108
    %v114 = vmul.f32 %v71, %v108
    %v115 = vmul.f32 %v74, %v108
    %v116 = vmul.f32 %v77, %v108
    %v117 = vmul.f32 %v80, %v108
    %v118 = vmul.f32 %v83, %v108
    %v119 = vmul.f32 %v86, %v108
    %v120 = vmul.f32 %v89, %v108
    %v121 = vmul.f32 %v92, %v108
    %v122 = vmul.f32 %v95, %v108
    %v123 = vmul.f32 %v98, %v108
    %v124 = vmul.f32 %v101, %v108
    %v125 = vadd.f32 %v109, 1e-06
    %v126 = vadd.f32 %v110, 1e-06
    %v127 = vadd.f32 %v111, 1e-06
    %v128 = vadd.f32 %v112, 1e-06
    %v129 = vadd.f32 %v113, 1e-06
    %v130 = vadd.f32 %v114, 1e-06
    %v131 = vadd.f32 %v115, 1e-06
    %v132 = vadd.f32 %v116, 1e-06
    %v133 = vadd.f32 %v117, 1e-06
    %v134 = vadd.f32 %v118, 1e-06
    %v135 = vadd.f32 %v119, 1e-06
    %v136 = vadd.f32 %v120, 1e-06
    %v137 = vadd.f32 %v121, 1e-06
    %v138 = vadd.f32 %v122, 1e-06
    %v139 = vadd.f32 %v123, 1e-06
    %v140 = vadd.f32 %v124, 1e-06
    %v141 = vrsqrt.pop %v125
    %v142 = vmul.f32 %v141, %v125
    %v143 = vmul.f32 %v142, %v141
    %v144 = vmul.f32 0.5, %v143
    %v145 = vsub.f32 1.5, %v144
    %v146 = vmul.f32 %v141, %v145
    %vm147 = vweird.f32 %v125
    %vm148 = vweird.f32 %v141
    %vm149 = vmor %vm147, %vm148
    %v150 = vsel %vm149, %v141, %v146
    %v151 = vrsqrt.pop %v126
    %v152 = vmul.f32 %v151, %v126
    %v153 = vmul.f32 %v152, %v151
    %v154 = vmul.f32 0.5, %v153
    %v155 = vsub.f32 1.5, %v154
    %v156 = vmul.f32 %v151, %v155
    %vm157 = vweird.f32 %v126
    %vm158 = vweird.f32 %v151
    %vm159 = vmor %vm157, %vm158
    %v160 = vsel %vm159, %v151, %v156
    %v161 = vrsqrt.pop %v127
    %v162 = vmul.f32 %v161, %v127
    %v163 = vmul.f32 %v162, %v161
    %v164 = vmul.f32 0.5, %v163
    %v165 = vsub.f32 1.5, %v164
    %v166 = vmul.f32 %v161, %v165
    %vm167 = vweird.f32 %v127
    %vm168 = vweird.f32 %v161
    %vm169 = vmor %vm167, %vm168
    %v170 = vsel %vm169, %v161, %v166
    %v171 = vrsqrt.pop %v128
    %v172 = vmul.f32 %v171, %v128
    %v173 = vmul.f32 %v172, %v171
    %v174 = vmul.f32 0.5, %v173
    %v175 = vsub.f32 1.5, %v174
    %v176 = vmul.f32 %v171, %v175
    %vm177 = vweird.f32 %v128
    %vm178 = vweird.f32 %v171
    %vm179 = vmor %vm177, %vm178
    %v180 = vsel %vm179, %v171, %v176
    %v181 = vrsqrt.pop %v129
    %v182 = vmul.f32 %v181, %v129
    %v183 = vmul.f32 %v182, %v181
    %v184 = vmul.f32 0.5, %v183
    %v185 = vsub.f32 1.5, %v184
    %v186 = vmul.f32 %v181, %v185
    %vm187 = vweird.f32 %v129
    %vm188 = vweird.f32 %v181
    %vm189 = vmor %vm187, %vm188
    %v190 = vsel %vm189, %v181, %v186
    %v191 = vrsqrt.pop %v130
    %v192 = vmul.f32 %v191, %v130
    %v193 = vmul.f32 %v192, %v191
    %v194 = vmul.f32 0.5, %v193
    %v195 = vsub.f32 1.5, %v194
    %v196 = vmul.f32 %v191, %v195
    %vm197 = vweird.f32 %v130
    %vm198 = vweird.f32 %v191
    %vm199 = vmor %vm197, %vm198
    %v200 = vsel %vm199, %v191, %v196
    %v201 = vrsqrt.pop %v131
    %v202 = vmul.f32 %v201, %v131
    %v203 = vmul.f32 %v202, %v201
    %v204 = vmul.f32 0.5, %v203
    %v205 = vsub.f32 1.5, %v204
    %v206 = vmul.f32 %v201, %v205
    %vm207 = vweird.f32 %v131
    %vm208 = vweird.f32 %v201
    %vm209 = vmor %vm207, %vm208
    %v210 = vsel %vm209, %v201, %v206
    %v211 = vrsqrt.pop %v132
    %v212 = vmul.f32 %v211, %v132
    %v213 = vmul.f32 %v212, %v211
    %v214 = vmul.f32 0.5, %v213
    %v215 = vsub.f32 1.5, %v214
    %v216 = vmul.f32 %v211, %v215
    %vm217 = vweird.f32 %v132
    %vm218 = vweird.f32 %v211
    %vm219 = vmor %vm217, %vm218
    %v220 = vsel %vm219, %v211, %v216
    %v221 = vrsqrt.pop %v133
    %v222 = vmul.f32 %v221, %v133
    %v223 = vmul.f32 %v222, %v221
    %v224 = vmul.f32 0.5, %v223
    %v225 = vsub.f32 1.5, %v224
    %v226 = vmul.f32 %v221, %v225
    %vm227 = vweird.f32 %v133
    %vm228 = vweird.f32 %v221
    %vm229 = vmor %vm227, %vm228
    %v230 = vsel %vm229, %v221, %v226
    %v231 = vrsqrt.pop %v134
    %v232 = vmul.f32 %v231, %v134
    %v233 = vmul.f32 %v232, %v231
    %v234 = vmul.f32 0.5, %v233
    %v235 = vsub.f32 1.5, %v234
    %v236 = vmul.f32 %v231, %v235
    %vm237 = vweird.f32 %v134
    %vm238 = vweird.f32 %v231
    %vm239 = vmor %vm237, %vm238
    %v240 = vsel %vm239, %v231, %v236
    %v241 = vrsqrt.pop %v135
    %v242 = vmul.f32 %v241, %v135
    %v243 = vmul.f32 %v242, %v241
    %v244 = vmul.f32 0.5, %v243
    %v245 = vsub.f32 1.5, %v244
    %v246 = vmul.f32 %v241, %v245
    %vm247 = vweird.f32 %v135
    %vm248 = vweird.f32 %v241
    %vm249 = vmor %vm247, %vm248
    %v250 = vsel %vm249, %v241, %v246
    %v251 = vrsqrt.pop %v136
    %v252 = vmul.f32 %v251, %v136
    %v253 = vmul.f32 %v252, %v251
    %v254 = vmul.f32 0.5, %v253
    %v255 = vsub.f32 1.5, %v254
    %v256 = vmul.f32 %v251, %v255
    %vm257 = vweird.f32 %v136
    %vm258 = vweird.f32 %v251
    %vm259 = vmor %vm257, %vm258
    %v260 = vsel %vm259, %v251, %v256
    %v261 = vrsqrt.pop %v137
    %v262 = vmul.f32 %v261, %v137
    %v263 = vmul.f32 %v262, %v261
    %v264 = vmul.f32 0.5, %v263
    %v265 = vsub.f32 1.5, %v264
    %v266 = vmul.f32 %v261, %v265
    %vm267 = vweird.f32 %v137
    %vm268 = vweird.f32 %v261
    %vm269 = vmor %vm267, %vm268
    %v270 = vsel %vm269, %v261, %v266
    %v271 = vrsqrt.pop %v138
    %v272 = vmul.f32 %v271, %v138
    %v273 = vmul.f32 %v272, %v271
    %v274 = vmul.f32 0.5, %v273
    %v275 = vsub.f32 1.5, %v274
    %v276 = vmul.f32 %v271, %v275
    %vm277 = vweird.f32 %v138
    %vm278 = vweird.f32 %v271
    %vm279 = vmor %vm277, %vm278
    %v280 = vsel %vm279, %v271, %v276
    %v281 = vrsqrt.pop %v139
    %v282 = vmul.f32 %v281, %v139
    %v283 = vmul.f32 %v282, %v281
    %v284 = vmul.f32 0.5, %v283
    %v285 = vsub.f32 1.5, %v284
    %v286 = vmul.f32 %v281, %v285
    %vm287 = vweird.f32 %v139
    %vm288 = vweird.f32 %v281
    %vm289 = vmor %vm287, %vm288
    %v290 = vsel %vm289, %v281, %v286
    %v291 = vrsqrt.pop %v140
    %v292 = vmul.f32 %v291, %v140
    %v293 = vmul.f32 %v292, %v291
    %v294 = vmul.f32 0.5, %v293
    %v295 = vsub.f32 1.5, %v294
    %v296 = vmul.f32 %v291, %v295
    %vm297 = vweird.f32 %v140
    %vm298 = vweird.f32 %v291
    %vm299 = vmor %vm297, %vm298
    %v300 = vsel %vm299, %v291, %v296
    %v301 = vmul.f32 %v21, %v150
    %v302 = vmul.f32 %v22, %v160
    %v303 = vmul.f32 %v23, %v170
    %v304 = vmul.f32 %v24, %v180
    %v305 = vmul.f32 %v25, %v190
    %v306 = vmul.f32 %v26, %v200
    %v307 = vmul.f32 %v27, %v210
    %v308 = vmul.f32 %v28, %v220
    %v309 = vmul.f32 %v29, %v230
    %v310 = vmul.f32 %v30, %v240
    %v311 = vmul.f32 %v31, %v250
    %v312 = vmul.f32 %v32, %v260
    %v313 = vmul.f32 %v33, %v270
    %v314 = vmul.f32 %v34, %v280
    %v315 = vmul.f32 %v35, %v290
    %v316 = vmul.f32 %v36, %v300
    %v317 = vld [vmem:[%s3] sm:$0x1]
    %v319 = vperm.slane %v317, 0
    %v321 = vmul.f32 %v301, %v319
    %v322 = vmul.f32 %v302, %v319
    %v323 = vmul.f32 %v303, %v319
    %v324 = vmul.f32 %v304, %v319
    %v325 = vmul.f32 %v305, %v319
    %v326 = vmul.f32 %v306, %v319
    %v327 = vmul.f32 %v307, %v319
    %v328 = vmul.f32 %v308, %v319
    %v329 = vmul.f32 %v309, %v319
    %v330 = vmul.f32 %v310, %v319
    %v331 = vmul.f32 %v311, %v319
    %v332 = vmul.f32 %v312, %v319
    %v333 = vmul.f32 %v313, %v319
    %v334 = vmul.f32 %v314, %v319
    %v335 = vmul.f32 %v315, %v319
    %v336 = vmul.f32 %v316, %v319
    %v337 = vmul.f32 %v321, 0.35355338
    %v338 = vmul.f32 %v322, 0.35355338
    %v339 = vmul.f32 %v323, 0.35355338
    %v340 = vmul.f32 %v324, 0.35355338
    %v341 = vmul.f32 %v325, 0.35355338
    %v342 = vmul.f32 %v326, 0.35355338
    %v343 = vmul.f32 %v327, 0.35355338
    %v344 = vmul.f32 %v328, 0.35355338
    %v345 = vmul.f32 %v329, 0.35355338
    %v346 = vmul.f32 %v330, 0.35355338
    %v347 = vmul.f32 %v331, 0.35355338
    %v348 = vmul.f32 %v332, 0.35355338
    %v349 = vmul.f32 %v333, 0.35355338
    %v350 = vmul.f32 %v334, 0.35355338
    %v351 = vmul.f32 %v335, 0.35355338
    %v352 = vmul.f32 %v336, 0.35355338
    %353 = vst.msk [vmem:[#allocation2] sm:$0xff] %vm53, %v337
    %354 = vst.msk [vmem:[#allocation2 + $0x8] sm:$0xff] %vm53, %v338
    %355 = vst.msk [vmem:[#allocation2 + $0x10] sm:$0xff] %vm53, %v339
    %356 = vst.msk [vmem:[#allocation2 + $0x18] sm:$0xff] %vm53, %v340
    %357 = vst.msk [vmem:[#allocation2 + $0x20] sm:$0xff] %vm53, %v341
    %358 = vst.msk [vmem:[#allocation2 + $0x28] sm:$0xff] %vm53, %v342
    %359 = vst.msk [vmem:[#allocation2 + $0x30] sm:$0xff] %vm53, %v343
    %360 = vst.msk [vmem:[#allocation2 + $0x38] sm:$0xff] %vm53, %v344
    %361 = vst.msk [vmem:[#allocation2 + $0x40] sm:$0xff] %vm53, %v345
    %362 = vst.msk [vmem:[#allocation2 + $0x48] sm:$0xff] %vm53, %v346
    %363 = vst.msk [vmem:[#allocation2 + $0x50] sm:$0xff] %vm53, %v347
    %364 = vst.msk [vmem:[#allocation2 + $0x58] sm:$0xff] %vm53, %v348
    %365 = vst.msk [vmem:[#allocation2 + $0x60] sm:$0xff] %vm53, %v349
    %366 = vst.msk [vmem:[#allocation2 + $0x68] sm:$0xff] %vm53, %v350
    %367 = vst.msk [vmem:[#allocation2 + $0x70] sm:$0xff] %vm53, %v351
    %368 = vst.msk [vmem:[#allocation2 + $0x78] sm:$0xff] %vm53, %v352
    %vm369 = vcmask 7168
    %370 = vst.msk [vmem:[#allocation3] sm:$0xff] %vm369, -inf
    %371 = vst.msk [vmem:[#allocation3 + $0x8] sm:$0xff] %vm369, -inf
    %372 = vst.msk [vmem:[#allocation3 + $0x10] sm:$0xff] %vm369, -inf
    %373 = vst.msk [vmem:[#allocation3 + $0x18] sm:$0xff] %vm369, -inf
    %374 = vst.msk [vmem:[#allocation3 + $0x20] sm:$0xff] %vm369, -inf
    %375 = vst.msk [vmem:[#allocation3 + $0x28] sm:$0xff] %vm369, -inf
    %376 = vst.msk [vmem:[#allocation3 + $0x30] sm:$0xff] %vm369, -inf
    %377 = vst.msk [vmem:[#allocation3 + $0x38] sm:$0xff] %vm369, -inf
    %378 = vst.msk [vmem:[#allocation3 + $0x40] sm:$0xff] %vm369, -inf
    %379 = vst.msk [vmem:[#allocation3 + $0x48] sm:$0xff] %vm369, -inf
    %380 = vst.msk [vmem:[#allocation3 + $0x50] sm:$0xff] %vm369, -inf
    %381 = vst.msk [vmem:[#allocation3 + $0x58] sm:$0xff] %vm369, -inf
    %382 = vst.msk [vmem:[#allocation3 + $0x60] sm:$0xff] %vm369, -inf
    %383 = vst.msk [vmem:[#allocation3 + $0x68] sm:$0xff] %vm369, -inf
    %384 = vst.msk [vmem:[#allocation3 + $0x70] sm:$0xff] %vm369, -inf
    %385 = vst.msk [vmem:[#allocation3 + $0x78] sm:$0xff] %vm369, -inf
    %386 = vst.msk [vmem:[#allocation4] sm:$0xff] %vm369, 0.0
    %387 = vst.msk [vmem:[#allocation4 + $0x8] sm:$0xff] %vm369, 0.0
    %388 = vst.msk [vmem:[#allocation4 + $0x10] sm:$0xff] %vm369, 0.0
    %389 = vst.msk [vmem:[#allocation4 + $0x18] sm:$0xff] %vm369, 0.0
    %390 = vst.msk [vmem:[#allocation4 + $0x20] sm:$0xff] %vm369, 0.0
    %391 = vst.msk [vmem:[#allocation4 + $0x28] sm:$0xff] %vm369, 0.0
    %392 = vst.msk [vmem:[#allocation4 + $0x30] sm:$0xff] %vm369, 0.0
    %393 = vst.msk [vmem:[#allocation4 + $0x38] sm:$0xff] %vm369, 0.0
    %394 = vst.msk [vmem:[#allocation4 + $0x40] sm:$0xff] %vm369, 0.0
    %395 = vst.msk [vmem:[#allocation4 + $0x48] sm:$0xff] %vm369, 0.0
    %396 = vst.msk [vmem:[#allocation4 + $0x50] sm:$0xff] %vm369, 0.0
    %397 = vst.msk [vmem:[#allocation4 + $0x58] sm:$0xff] %vm369, 0.0
    %398 = vst.msk [vmem:[#allocation4 + $0x60] sm:$0xff] %vm369, 0.0
    %399 = vst.msk [vmem:[#allocation4 + $0x68] sm:$0xff] %vm369, 0.0
    %400 = vst.msk [vmem:[#allocation4 + $0x70] sm:$0xff] %vm369, 0.0
    %401 = vst.msk [vmem:[#allocation4 + $0x78] sm:$0xff] %vm369, 0.0
    %402 = vst.msk [vmem:[#allocation5] sm:$0xff] %vm53, 0.0
    %403 = vst.msk [vmem:[#allocation5 + $0x8] sm:$0xff] %vm53, 0.0
    %404 = vst.msk [vmem:[#allocation5 + $0x10] sm:$0xff] %vm53, 0.0
    %405 = vst.msk [vmem:[#allocation5 + $0x18] sm:$0xff] %vm53, 0.0
    %406 = vst.msk [vmem:[#allocation5 + $0x20] sm:$0xff] %vm53, 0.0
    %407 = vst.msk [vmem:[#allocation5 + $0x28] sm:$0xff] %vm53, 0.0
    %408 = vst.msk [vmem:[#allocation5 + $0x30] sm:$0xff] %vm53, 0.0
    %409 = vst.msk [vmem:[#allocation5 + $0x38] sm:$0xff] %vm53, 0.0
    %410 = vst.msk [vmem:[#allocation5 + $0x40] sm:$0xff] %vm53, 0.0
    %411 = vst.msk [vmem:[#allocation5 + $0x48] sm:$0xff] %vm53, 0.0
    %412 = vst.msk [vmem:[#allocation5 + $0x50] sm:$0xff] %vm53, 0.0
    %413 = vst.msk [vmem:[#allocation5 + $0x58] sm:$0xff] %vm53, 0.0
    %414 = vst.msk [vmem:[#allocation5 + $0x60] sm:$0xff] %vm53, 0.0
    %415 = vst.msk [vmem:[#allocation5 + $0x68] sm:$0xff] %vm53, 0.0
    %416 = vst.msk [vmem:[#allocation5 + $0x70] sm:$0xff] %vm53, 0.0
    %417 = vst.msk [vmem:[#allocation5 + $0x78] sm:$0xff] %vm53, 0.0
  $region21: #{cross_attention_forward.8} parent=0 // pred_fallthru
    _
  %v418 = vld [vmem:[#allocation2] sm:$0xff]
  %v419 = vld [vmem:[#allocation2 + $0x8] sm:$0xff]
  %v420 = vld [vmem:[#allocation2 + $0x10] sm:$0xff]
  %v421 = vld [vmem:[#allocation2 + $0x18] sm:$0xff]
  %v422 = vld [vmem:[#allocation2 + $0x20] sm:$0xff]
  %v423 = vld [vmem:[#allocation2 + $0x28] sm:$0xff]
  %v424 = vld [vmem:[#allocation2 + $0x30] sm:$0xff]
  %v425 = vld [vmem:[#allocation2 + $0x38] sm:$0xff]
  %v426 = vld [vmem:[#allocation2 + $0x40] sm:$0xff]
  %v427 = vld [vmem:[#allocation2 + $0x48] sm:$0xff]
  %v428 = vld [vmem:[#allocation2 + $0x50] sm:$0xff]
  %v429 = vld [vmem:[#allocation2 + $0x58] sm:$0xff]
  %v430 = vld [vmem:[#allocation2 + $0x60] sm:$0xff]
  %v431 = vld [vmem:[#allocation2 + $0x68] sm:$0xff]
  %v432 = vld [vmem:[#allocation2 + $0x70] sm:$0xff]
  %v433 = vld [vmem:[#allocation2 + $0x78] sm:$0xff]
  %v434 = vld [vmem:[%s1] sm:$0xff]
  %v435 = vld [vmem:[%s1 + $0x8] sm:$0xff]
  %v436 = vld [vmem:[%s1 + $0x10] sm:$0xff]
  %v437 = vld [vmem:[%s1 + $0x18] sm:$0xff]
  %v438 = vld [vmem:[%s1 + $0x20] sm:$0xff]
  %v439 = vld [vmem:[%s1 + $0x28] sm:$0xff]
  %v440 = vld [vmem:[%s1 + $0x30] sm:$0xff]
  %v441 = vld [vmem:[%s1 + $0x38] sm:$0xff]
  %vm442 = vcmask 64512
  %v444 = vsel %vm442, %v418, 0
  %v447 = vsel %vm442, %v419, 0
  %v450 = vsel %vm442, %v434, 0
  %452 = vmatpush.xpose.msra.mxu0 0.0
  %453 = vmatpush.xpose.msra.mxu0 0.0
  %454 = vmatpush.xpose.msra.mxu0 0.0
  %455 = vmatpush.xpose.msra.mxu0 0.0
  %456 = vmatpush.xpose.msra.mxu0 0.0
  %457 = vmatpush.xpose.msra.mxu0 0.0
  %458 = vmatpush.xpose.msra.mxu0 0.0
  %459 = vmatpush.xpose.msra.mxu0 0.0
  %460 = vmatpush.xpose.msra.mxu0 0.0
  %461 = vmatpush.xpose.msra.mxu0 0.0
  %462 = vmatpush.xpose.msra.mxu0 0.0
  %463 = vmatpush.xpose.msra.mxu0 0.0
  %464 = vmatpush.xpose.msra.mxu0 0.0
  %465 = vmatpush.xpose.msra.mxu0 0.0
  %466 = vmatpush.xpose.msra.mxu0 0.0
  %467 = vmatpush.xpose.msra.mxu0 %v450
  %468 = vmatmul.f32.gmra.mxu0 %v444
  %v469 = vpop.f32.mrf.mxu0
  %v470 = vadd.f32 0.0, %v469
  %471 = vmatmul.f32.gmra.mxu0 %v447
  %v472 = vpop.f32.mrf.mxu0
  %v473 = vadd.f32 0.0, %v472
  %474 = vdwg.mxu0
  %v476 = vsel %vm442, %v420, 0
  %v479 = vsel %vm442, %v421, 0
  %v482 = vsel %vm442, %v435, 0
  %484 = vmatpush.xpose.msra.mxu0 0.0
  %485 = vmatpush.xpose.msra.mxu0 0.0
  %486 = vmatpush.xpose.msra.mxu0 0.0
  %487 = vmatpush.xpose.msra.mxu0 0.0
  %488 = vmatpush.xpose.msra.mxu0 0.0
  %489 = vmatpush.xpose.msra.mxu0 0.0
  %490 = vmatpush.xpose.msra.mxu0 0.0
  %491 = vmatpush.xpose.msra.mxu0 0.0
  %492 = vmatpush.xpose.msra.mxu0 0.0
  %493 = vmatpush.xpose.msra.mxu0 0.0
  %494 = vmatpush.xpose.msra.mxu0 0.0
  %495 = vmatpush.xpose.msra.mxu0 0.0
  %496 = vmatpush.xpose.msra.mxu0 0.0
  %497 = vmatpush.xpose.msra.mxu0 0.0
  %498 = vmatpush.xpose.msra.mxu0 0.0
  %499 = vmatpush.xpose.msra.mxu0 %v482
  %500 = vmatmul.f32.gmra.mxu0 %v476
  %v501 = vpop.f32.mrf.mxu0
  %v502 = vadd.f32 0.0, %v501
  %503 = vmatmul.f32.gmra.mxu0 %v479
  %v504 = vpop.f32.mrf.mxu0
  %v505 = vadd.f32 0.0, %v504
  %506 = vdwg.mxu0
  %v508 = vsel %vm442, %v422, 0
  %v511 = vsel %vm442, %v423, 0
  %v514 = vsel %vm442, %v436, 0
  %516 = vmatpush.xpose.msra.mxu0 0.0
  %517 = vmatpush.xpose.msra.mxu0 0.0
  %518 = vmatpush.xpose.msra.mxu0 0.0
  %519 = vmatpush.xpose.msra.mxu0 0.0
  %520 = vmatpush.xpose.msra.mxu0 0.0
  %521 = vmatpush.xpose.msra.mxu0 0.0
  %522 = vmatpush.xpose.msra.mxu0 0.0
  %523 = vmatpush.xpose.msra.mxu0 0.0
  %524 = vmatpush.xpose.msra.mxu0 0.0
  %525 = vmatpush.xpose.msra.mxu0 0.0
  %526 = vmatpush.xpose.msra.mxu0 0.0
  %527 = vmatpush.xpose.msra.mxu0 0.0
  %528 = vmatpush.xpose.msra.mxu0 0.0
  %529 = vmatpush.xpose.msra.mxu0 0.0
  %530 = vmatpush.xpose.msra.mxu0 0.0
  %531 = vmatpush.xpose.msra.mxu0 %v514
  %532 = vmatmul.f32.gmra.mxu0 %v508
  %v533 = vpop.f32.mrf.mxu0
  %v534 = vadd.f32 0.0, %v533
  %535 = vmatmul.f32.gmra.mxu0 %v511
  %v536 = vpop.f32.mrf.mxu0
  %v537 = vadd.f32 0.0, %v536
  %538 = vdwg.mxu0
  %v540 = vsel %vm442, %v424, 0
  %v543 = vsel %vm442, %v425, 0
  %v546 = vsel %vm442, %v437, 0
  %548 = vmatpush.xpose.msra.mxu0 0.0
  %549 = vmatpush.xpose.msra.mxu0 0.0
  %550 = vmatpush.xpose.msra.mxu0 0.0
  %551 = vmatpush.xpose.msra.mxu0 0.0
  %552 = vmatpush.xpose.msra.mxu0 0.0
  %553 = vmatpush.xpose.msra.mxu0 0.0
  %554 = vmatpush.xpose.msra.mxu0 0.0
  %555 = vmatpush.xpose.msra.mxu0 0.0
  %556 = vmatpush.xpose.msra.mxu0 0.0
  %557 = vmatpush.xpose.msra.mxu0 0.0
  %558 = vmatpush.xpose.msra.mxu0 0.0
  %559 = vmatpush.xpose.msra.mxu0 0.0
  %560 = vmatpush.xpose.msra.mxu0 0.0
  %561 = vmatpush.xpose.msra.mxu0 0.0
  %562 = vmatpush.xpose.msra.mxu0 0.0
  %563 = vmatpush.xpose.msra.mxu0 %v546
  %564 = vmatmul.f32.gmra.mxu0 %v540
  %v565 = vpop.f32.mrf.mxu0
  %v566 = vadd.f32 0.0, %v565
  %567 = vmatmul.f32.gmra.mxu0 %v543
  %v568 = vpop.f32.mrf.mxu0
  %v569 = vadd.f32 0.0, %v568
  %570 = vdwg.mxu0
  %v572 = vsel %vm442, %v426, 0
  %v575 = vsel %vm442, %v427, 0
  %v578 = vsel %vm442, %v438, 0
  %580 = vmatpush.xpose.msra.mxu0 0.0
  %581 = vmatpush.xpose.msra.mxu0 0.0
  %582 = vmatpush.xpose.msra.mxu0 0.0
  %583 = vmatpush.xpose.msra.mxu0 0.0
  %584 = vmatpush.xpose.msra.mxu0 0.0
  %585 = vmatpush.xpose.msra.mxu0 0.0
  %586 = vmatpush.xpose.msra.mxu0 0.0
  %587 = vmatpush.xpose.msra.mxu0 0.0
  %588 = vmatpush.xpose.msra.mxu0 0.0
  %589 = vmatpush.xpose.msra.mxu0 0.0
  %590 = vmatpush.xpose.msra.mxu0 0.0
  %591 = vmatpush.xpose.msra.mxu0 0.0
  %592 = vmatpush.xpose.msra.mxu0 0.0
  %593 = vmatpush.xpose.msra.mxu0 0.0
  %594 = vmatpush.xpose.msra.mxu0 0.0
  %595 = vmatpush.xpose.msra.mxu0 %v578
  %596 = vmatmul.f32.gmra.mxu0 %v572
  %v597 = vpop.f32.mrf.mxu0
  %v598 = vadd.f32 0.0, %v597
  %599 = vmatmul.f32.gmra.mxu0 %v575
  %v600 = vpop.f32.mrf.mxu0
  %v601 = vadd.f32 0.0, %v600
  %602 = vdwg.mxu0
  %v604 = vsel %vm442, %v428, 0
  %v607 = vsel %vm442, %v429, 0
  %v610 = vsel %vm442, %v439, 0
  %612 = vmatpush.xpose.msra.mxu0 0.0
  %613 = vmatpush.xpose.msra.mxu0 0.0
  %614 = vmatpush.xpose.msra.mxu0 0.0
  %615 = vmatpush.xpose.msra.mxu0 0.0
  %616 = vmatpush.xpose.msra.mxu0 0.0
  %617 = vmatpush.xpose.msra.mxu0 0.0
  %618 = vmatpush.xpose.msra.mxu0 0.0
  %619 = vmatpush.xpose.msra.mxu0 0.0
  %620 = vmatpush.xpose.msra.mxu0 0.0
  %621 = vmatpush.xpose.msra.mxu0 0.0
  %622 = vmatpush.xpose.msra.mxu0 0.0
  %623 = vmatpush.xpose.msra.mxu0 0.0
  %624 = vmatpush.xpose.msra.mxu0 0.0
  %625 = vmatpush.xpose.msra.mxu0 0.0
  %626 = vmatpush.xpose.msra.mxu0 0.0
  %627 = vmatpush.xpose.msra.mxu0 %v610
  %628 = vmatmul.f32.gmra.mxu0 %v604
  %v629 = vpop.f32.mrf.mxu0
  %v630 = vadd.f32 0.0, %v629
  %631 = vmatmul.f32.gmra.mxu0 %v607
  %v632 = vpop.f32.mrf.mxu0
  %v633 = vadd.f32 0.0, %v632
  %634 = vdwg.mxu0
  %v636 = vsel %vm442, %v430, 0
  %v639 = vsel %vm442, %v431, 0
  %v642 = vsel %vm442, %v440, 0
  %644 = vmatpush.xpose.msra.mxu0 0.0
  %645 = vmatpush.xpose.msra.mxu0 0.0
  %646 = vmatpush.xpose.msra.mxu0 0.0
  %647 = vmatpush.xpose.msra.mxu0 0.0
  %648 = vmatpush.xpose.msra.mxu0 0.0
  %649 = vmatpush.xpose.msra.mxu0 0.0
  %650 = vmatpush.xpose.msra.mxu0 0.0
  %651 = vmatpush.xpose.msra.mxu0 0.0
  %652 = vmatpush.xpose.msra.mxu0 0.0
  %653 = vmatpush.xpose.msra.mxu0 0.0
  %654 = vmatpush.xpose.msra.mxu0 0.0
  %655 = vmatpush.xpose.msra.mxu0 0.0
  %656 = vmatpush.xpose.msra.mxu0 0.0
  %657 = vmatpush.xpose.msra.mxu0 0.0
  %658 = vmatpush.xpose.msra.mxu0 0.0
  %659 = vmatpush.xpose.msra.mxu0 %v642
  %660 = vmatmul.f32.gmra.mxu0 %v636
  %v661 = vpop.f32.mrf.mxu0
  %v662 = vadd.f32 0.0, %v661
  %663 = vmatmul.f32.gmra.mxu0 %v639
  %v664 = vpop.f32.mrf.mxu0
  %v665 = vadd.f32 0.0, %v664
  %666 = vdwg.mxu0
  %v668 = vsel %vm442, %v432, 0
  %v671 = vsel %vm442, %v433, 0
  %v674 = vsel %vm442, %v441, 0
  %676 = vmatpush.xpose.msra.mxu0 0.0
  %677 = vmatpush.xpose.msra.mxu0 0.0
  %678 = vmatpush.xpose.msra.mxu0 0.0
  %679 = vmatpush.xpose.msra.mxu0 0.0
  %680 = vmatpush.xpose.msra.mxu0 0.0
  %681 = vmatpush.xpose.msra.mxu0 0.0
  %682 = vmatpush.xpose.msra.mxu0 0.0
  %683 = vmatpush.xpose.msra.mxu0 0.0
  %684 = vmatpush.xpose.msra.mxu0 0.0
  %685 = vmatpush.xpose.msra.mxu0 0.0
  %686 = vmatpush.xpose.msra.mxu0 0.0
  %687 = vmatpush.xpose.msra.mxu0 0.0
  %688 = vmatpush.xpose.msra.mxu0 0.0
  %689 = vmatpush.xpose.msra.mxu0 0.0
  %690 = vmatpush.xpose.msra.mxu0 0.0
  %691 = vmatpush.xpose.msra.mxu0 %v674
  %692 = vmatmul.f32.gmra.mxu0 %v668
  %v693 = vpop.f32.mrf.mxu0
  %v694 = vadd.f32 0.0, %v693
  %695 = vmatmul.f32.gmra.mxu0 %v671
  %v696 = vpop.f32.mrf.mxu0
  %v697 = vadd.f32 0.0, %v696
  %698 = vdwg.mxu0
  %v699 = vld [vmem:[#allocation3] sm:$0xff]
  %v700 = vld [vmem:[#allocation3 + $0x8] sm:$0xff]
  %v701 = vld [vmem:[#allocation3 + $0x10] sm:$0xff]
  %v702 = vld [vmem:[#allocation3 + $0x18] sm:$0xff]
  %v703 = vld [vmem:[#allocation3 + $0x20] sm:$0xff]
  %v704 = vld [vmem:[#allocation3 + $0x28] sm:$0xff]
  %v705 = vld [vmem:[#allocation3 + $0x30] sm:$0xff]
  %v706 = vld [vmem:[#allocation3 + $0x38] sm:$0xff]
  %v707 = vld [vmem:[#allocation3 + $0x40] sm:$0xff]
  %v708 = vld [vmem:[#allocation3 + $0x48] sm:$0xff]
  %v709 = vld [vmem:[#allocation3 + $0x50] sm:$0xff]
  %v710 = vld [vmem:[#allocation3 + $0x58] sm:$0xff]
  %v711 = vld [vmem:[#allocation3 + $0x60] sm:$0xff]
  %v712 = vld [vmem:[#allocation3 + $0x68] sm:$0xff]
  %v713 = vld [vmem:[#allocation3 + $0x70] sm:$0xff]
  %v714 = vld [vmem:[#allocation3 + $0x78] sm:$0xff]
  %v715 = vsel %vm442, %v470, -inf
  %716 = vmax.xlane.f32.xlu0 %v715
  %v717 = vpop.xlane.xlu0 %716
  %v718 = vsel %vm442, %v473, -inf
  %719 = vmax.xlane.f32.xlu0 %v718
  %v720 = vpop.xlane.xlu0 %719
  %v721 = vsel %vm442, %v502, -inf
  %722 = vmax.xlane.f32.xlu0 %v721
  %v723 = vpop.xlane.xlu0 %722
  %v724 = vsel %vm442, %v505, -inf
  %725 = vmax.xlane.f32.xlu0 %v724
  %v726 = vpop.xlane.xlu0 %725
  %v727 = vsel %vm442, %v534, -inf
  %728 = vmax.xlane.f32.xlu0 %v727
  %v729 = vpop.xlane.xlu0 %728
  %v730 = vsel %vm442, %v537, -inf
  %731 = vmax.xlane.f32.xlu0 %v730
  %v732 = vpop.xlane.xlu0 %731
  %v733 = vsel %vm442, %v566, -inf
  %734 = vmax.xlane.f32.xlu0 %v733
  %v735 = vpop.xlane.xlu0 %734
  %v736 = vsel %vm442, %v569, -inf
  %737 = vmax.xlane.f32.xlu0 %v736
  %v738 = vpop.xlane.xlu0 %737
  %v739 = vsel %vm442, %v598, -inf
  %740 = vmax.xlane.f32.xlu0 %v739
  %v741 = vpop.xlane.xlu0 %740
  %v742 = vsel %vm442, %v601, -inf
  %743 = vmax.xlane.f32.xlu0 %v742
  %v744 = vpop.xlane.xlu0 %743
  %v745 = vsel %vm442, %v630, -inf
  %746 = vmax.xlane.f32.xlu0 %v745
  %v747 = vpop.xlane.xlu0 %746
  %v748 = vsel %vm442, %v633, -inf
  %749 = vmax.xlane.f32.xlu0 %v748
  %v750 = vpop.xlane.xlu0 %749
  %v751 = vsel %vm442, %v662, -inf
  %752 = vmax.xlane.f32.xlu0 %v751
  %v753 = vpop.xlane.xlu0 %752
  %v754 = vsel %vm442, %v665, -inf
  %755 = vmax.xlane.f32.xlu0 %v754
  %v756 = vpop.xlane.xlu0 %755
  %v757 = vsel %vm442, %v694, -inf
  %758 = vmax.xlane.f32.xlu0 %v757
  %v759 = vpop.xlane.xlu0 %758
  %v760 = vsel %vm442, %v697, -inf
  %761 = vmax.xlane.f32.xlu0 %v760
  %v762 = vpop.xlane.xlu0 %761
  %v763 = vmax.f32 %v699, %v717
  %v764 = vmax.f32 %v700, %v720
  %v765 = vmax.f32 %v701, %v723
  %v766 = vmax.f32 %v702, %v726
  %v767 = vmax.f32 %v703, %v729
  %v768 = vmax.f32 %v704, %v732
  %v769 = vmax.f32 %v705, %v735
  %v770 = vmax.f32 %v706, %v738
  %v771 = vmax.f32 %v707, %v741
  %v772 = vmax.f32 %v708, %v744
  %v773 = vmax.f32 %v709, %v747
  %v774 = vmax.f32 %v710, %v750
  %v775 = vmax.f32 %v711, %v753
  %v776 = vmax.f32 %v712, %v756
  %v777 = vmax.f32 %v713, %v759
  %v778 = vmax.f32 %v714, %v762
  %v779 = vsub.f32 %v699, %v763
  %v780 = vsub.f32 %v700, %v764
  %v781 = vsub.f32 %v701, %v765
  %v782 = vsub.f32 %v702, %v766
  %v783 = vsub.f32 %v703, %v767
  %v784 = vsub.f32 %v704, %v768
  %v785 = vsub.f32 %v705, %v769
  %v786 = vsub.f32 %v706, %v770
  %v787 = vsub.f32 %v707, %v771
  %v788 = vsub.f32 %v708, %v772
  %v789 = vsub.f32 %v709, %v773
  %v790 = vsub.f32 %v710, %v774
  %v791 = vsub.f32 %v711, %v775
  %v792 = vsub.f32 %v712, %v776
  %v793 = vsub.f32 %v713, %v777
  %v794 = vsub.f32 %v714, %v778
  %v795 = vmul.f32 %v779, 1.442695
  %v796 = vpow.pop %v795
  %v797 = vmul.f32 %v780, 1.442695
  %v798 = vpow.pop %v797
  %v799 = vmul.f32 %v781, 1.442695
  %v800 = vpow.pop %v799
  %v801 = vmul.f32 %v782, 1.442695
  %v802 = vpow.pop %v801
  %v803 = vmul.f32 %v783, 1.442695
  %v804 = vpow.pop %v803
  %v805 = vmul.f32 %v784, 1.442695
  %v806 = vpow.pop %v805
  %v807 = vmul.f32 %v785, 1.442695
  %v808 = vpow.pop %v807
  %v809 = vmul.f32 %v786, 1.442695
  %v810 = vpow.pop %v809
  %v811 = vmul.f32 %v787, 1.442695
  %v812 = vpow.pop %v811
  %v813 = vmul.f32 %v788, 1.442695
  %v814 = vpow.pop %v813
  %v815 = vmul.f32 %v789, 1.442695
  %v816 = vpow.pop %v815
  %v817 = vmul.f32 %v790, 1.442695
  %v818 = vpow.pop %v817
  %v819 = vmul.f32 %v791, 1.442695
  %v820 = vpow.pop %v819
  %v821 = vmul.f32 %v792, 1.442695
  %v822 = vpow.pop %v821
  %v823 = vmul.f32 %v793, 1.442695
  %v824 = vpow.pop %v823
  %v825 = vmul.f32 %v794, 1.442695
  %v826 = vpow.pop %v825
  %828 = vset.pattern.permute.xlu0 0
  %829 = vperm.xlu0 %828, %v763
  %v830 = vpop.permute.xlu0 %829
  %833 = vset.pattern.permute.xlu0 0
  %834 = vperm.xlu0 %833, %v764
  %v835 = vpop.permute.xlu0 %834
  %838 = vset.pattern.permute.xlu0 0
  %839 = vperm.xlu0 %838, %v765
  %v840 = vpop.permute.xlu0 %839
  %843 = vset.pattern.permute.xlu0 0
  %844 = vperm.xlu0 %843, %v766
  %v845 = vpop.permute.xlu0 %844
  %848 = vset.pattern.permute.xlu0 0
  %849 = vperm.xlu0 %848, %v767
  %v850 = vpop.permute.xlu0 %849
  %853 = vset.pattern.permute.xlu0 0
  %854 = vperm.xlu0 %853, %v768
  %v855 = vpop.permute.xlu0 %854
  %858 = vset.pattern.permute.xlu0 0
  %859 = vperm.xlu0 %858, %v769
  %v860 = vpop.permute.xlu0 %859
  %863 = vset.pattern.permute.xlu0 0
  %864 = vperm.xlu0 %863, %v770
  %v865 = vpop.permute.xlu0 %864
  %868 = vset.pattern.permute.xlu0 0
  %869 = vperm.xlu0 %868, %v771
  %v870 = vpop.permute.xlu0 %869
  %873 = vset.pattern.permute.xlu0 0
  %874 = vperm.xlu0 %873, %v772
  %v875 = vpop.permute.xlu0 %874
  %878 = vset.pattern.permute.xlu0 0
  %879 = vperm.xlu0 %878, %v773
  %v880 = vpop.permute.xlu0 %879
  %883 = vset.pattern.permute.xlu0 0
  %884 = vperm.xlu0 %883, %v774
  %v885 = vpop.permute.xlu0 %884
  %888 = vset.pattern.permute.xlu0 0
  %889 = vperm.xlu0 %888, %v775
  %v890 = vpop.permute.xlu0 %889
  %893 = vset.pattern.permute.xlu0 0
  %894 = vperm.xlu0 %893, %v776
  %v895 = vpop.permute.xlu0 %894
  %898 = vset.pattern.permute.xlu0 0
  %899 = vperm.xlu0 %898, %v777
  %v900 = vpop.permute.xlu0 %899
  %903 = vset.pattern.permute.xlu0 0
  %904 = vperm.xlu0 %903, %v778
  %v905 = vpop.permute.xlu0 %904
  %v907 = vsub.f32 %v470, %v830
  %v908 = vsub.f32 %v473, %v835
  %v909 = vsub.f32 %v502, %v840
  %v910 = vsub.f32 %v505, %v845
  %v911 = vsub.f32 %v534, %v850
  %v912 = vsub.f32 %v537, %v855
  %v913 = vsub.f32 %v566, %v860
  %v914 = vsub.f32 %v569, %v865
  %v915 = vsub.f32 %v598, %v870
  %v916 = vsub.f32 %v601, %v875
  %v917 = vsub.f32 %v630, %v880
  %v918 = vsub.f32 %v633, %v885
  %v919 = vsub.f32 %v662, %v890
  %v920 = vsub.f32 %v665, %v895
  %v921 = vsub.f32 %v694, %v900
  %v922 = vsub.f32 %v697, %v905
  %v923 = vmul.f32 %v907, 1.442695
  %v924 = vpow.pop %v923
  %v925 = vmul.f32 %v908, 1.442695
  %v926 = vpow.pop %v925
  %v927 = vmul.f32 %v909, 1.442695
  %v928 = vpow.pop %v927
  %v929 = vmul.f32 %v910, 1.442695
  %v930 = vpow.pop %v929
  %v931 = vmul.f32 %v911, 1.442695
  %v932 = vpow.pop %v931
  %v933 = vmul.f32 %v912, 1.442695
  %v934 = vpow.pop %v933
  %v935 = vmul.f32 %v913, 1.442695
  %v936 = vpow.pop %v935
  %v937 = vmul.f32 %v914, 1.442695
  %v938 = vpow.pop %v937
  %v939 = vmul.f32 %v915, 1.442695
  %v940 = vpow.pop %v939
  %v941 = vmul.f32 %v916, 1.442695
  %v942 = vpow.pop %v941
  %v943 = vmul.f32 %v917, 1.442695
  %v944 = vpow.pop %v943
  %v945 = vmul.f32 %v918, 1.442695
  %v946 = vpow.pop %v945
  %v947 = vmul.f32 %v919, 1.442695
  %v948 = vpow.pop %v947
  %v949 = vmul.f32 %v920, 1.442695
  %v950 = vpow.pop %v949
  %v951 = vmul.f32 %v921, 1.442695
  %v952 = vpow.pop %v951
  %v953 = vmul.f32 %v922, 1.442695
  %v954 = vpow.pop %v953
  %v955 = vld [vmem:[#allocation4] sm:$0xff]
  %v956 = vld [vmem:[#allocation4 + $0x8] sm:$0xff]
  %v957 = vld [vmem:[#allocation4 + $0x10] sm:$0xff]
  %v958 = vld [vmem:[#allocation4 + $0x18] sm:$0xff]
  %v959 = vld [vmem:[#allocation4 + $0x20] sm:$0xff]
  %v960 = vld [vmem:[#allocation4 + $0x28] sm:$0xff]
  %v961 = vld [vmem:[#allocation4 + $0x30] sm:$0xff]
  %v962 = vld [vmem:[#allocation4 + $0x38] sm:$0xff]
  %v963 = vld [vmem:[#allocation4 + $0x40] sm:$0xff]
  %v964 = vld [vmem:[#allocation4 + $0x48] sm:$0xff]
  %v965 = vld [vmem:[#allocation4 + $0x50] sm:$0xff]
  %v966 = vld [vmem:[#allocation4 + $0x58] sm:$0xff]
  %v967 = vld [vmem:[#allocation4 + $0x60] sm:$0xff]
  %v968 = vld [vmem:[#allocation4 + $0x68] sm:$0xff]
  %v969 = vld [vmem:[#allocation4 + $0x70] sm:$0xff]
  %v970 = vld [vmem:[#allocation4 + $0x78] sm:$0xff]
  %v971 = vmul.f32 %v796, %v955
  %v972 = vmul.f32 %v798, %v956
  %v973 = vmul.f32 %v800, %v957
  %v974 = vmul.f32 %v802, %v958
  %v975 = vmul.f32 %v804, %v959
  %v976 = vmul.f32 %v806, %v960
  %v977 = vmul.f32 %v808, %v961
  %v978 = vmul.f32 %v810, %v962
  %v979 = vmul.f32 %v812, %v963
  %v980 = vmul.f32 %v814, %v964
  %v981 = vmul.f32 %v816, %v965
  %v982 = vmul.f32 %v818, %v966
  %v983 = vmul.f32 %v820, %v967
  %v984 = vmul.f32 %v822, %v968
  %v985 = vmul.f32 %v824, %v969
  %v986 = vmul.f32 %v826, %v970
  %v987 = vsel %vm442, %v924, 0.0
  %988 = vadd.xlane.f32.xlu0 %v987
  %v989 = vpop.xlane.xlu0 %988
  %v990 = vsel %vm442, %v926, 0.0
  %991 = vadd.xlane.f32.xlu0 %v990
  %v992 = vpop.xlane.xlu0 %991
  %v993 = vsel %vm442, %v928, 0.0
  %994 = vadd.xlane.f32.xlu0 %v993
  %v995 = vpop.xlane.xlu0 %994
  %v996 = vsel %vm442, %v930, 0.0
  %997 = vadd.xlane.f32.xlu0 %v996
  %v998 = vpop.xlane.xlu0 %997
  %v999 = vsel %vm442, %v932, 0.0
  %1000 = vadd.xlane.f32.xlu0 %v999
  %v1001 = vpop.xlane.xlu0 %1000
  %v1002 = vsel %vm442, %v934, 0.0
  %1003 = vadd.xlane.f32.xlu0 %v1002
  %v1004 = vpop.xlane.xlu0 %1003
  %v1005 = vsel %vm442, %v936, 0.0
  %1006 = vadd.xlane.f32.xlu0 %v1005
  %v1007 = vpop.xlane.xlu0 %1006
  %v1008 = vsel %vm442, %v938, 0.0
  %1009 = vadd.xlane.f32.xlu0 %v1008
  %v1010 = vpop.xlane.xlu0 %1009
  %v1011 = vsel %vm442, %v940, 0.0
  %1012 = vadd.xlane.f32.xlu0 %v1011
  %v1013 = vpop.xlane.xlu0 %1012
  %v1014 = vsel %vm442, %v942, 0.0
  %1015 = vadd.xlane.f32.xlu0 %v1014
  %v1016 = vpop.xlane.xlu0 %1015
  %v1017 = vsel %vm442, %v944, 0.0
  %1018 = vadd.xlane.f32.xlu0 %v1017
  %v1019 = vpop.xlane.xlu0 %1018
  %v1020 = vsel %vm442, %v946, 0.0
  %1021 = vadd.xlane.f32.xlu0 %v1020
  %v1022 = vpop.xlane.xlu0 %1021
  %v1023 = vsel %vm442, %v948, 0.0
  %1024 = vadd.xlane.f32.xlu0 %v1023
  %v1025 = vpop.xlane.xlu0 %1024
  %v1026 = vsel %vm442, %v950, 0.0
  %1027 = vadd.xlane.f32.xlu0 %v1026
  %v1028 = vpop.xlane.xlu0 %1027
  %v1029 = vsel %vm442, %v952, 0.0
  %1030 = vadd.xlane.f32.xlu0 %v1029
  %v1031 = vpop.xlane.xlu0 %1030
  %v1032 = vsel %vm442, %v954, 0.0
  %1033 = vadd.xlane.f32.xlu0 %v1032
  %v1034 = vpop.xlane.xlu0 %1033
  %v1035 = vadd.f32 %v971, %v989
  %v1036 = vadd.f32 %v972, %v992
  %v1037 = vadd.f32 %v973, %v995
  %v1038 = vadd.f32 %v974, %v998
  %v1039 = vadd.f32 %v975, %v1001
  %v1040 = vadd.f32 %v976, %v1004
  %v1041 = vadd.f32 %v977, %v1007
  %v1042 = vadd.f32 %v978, %v1010
  %v1043 = vadd.f32 %v979, %v1013
  %v1044 = vadd.f32 %v980, %v1016
  %v1045 = vadd.f32 %v981, %v1019
  %v1046 = vadd.f32 %v982, %v1022
  %v1047 = vadd.f32 %v983, %v1025
  %v1048 = vadd.f32 %v984, %v1028
  %v1049 = vadd.f32 %v985, %v1031
  %v1050 = vadd.f32 %v986, %v1034
  %vm1051 = vcmask 7168
  %1052 = vst.msk [vmem:[#allocation4] sm:$0xff] %vm1051, %v1035
  %1053 = vst.msk [vmem:[#allocation4 + $0x8] sm:$0xff] %vm1051, %v1036
  %1054 = vst.msk [vmem:[#allocation4 + $0x10] sm:$0xff] %vm1051, %v1037
  %1055 = vst.msk [vmem:[#allocation4 + $0x18] sm:$0xff] %vm1051, %v1038
  %1056 = vst.msk [vmem:[#allocation4 + $0x20] sm:$0xff] %vm1051, %v1039
  %1057 = vst.msk [vmem:[#allocation4 + $0x28] sm:$0xff] %vm1051, %v1040
  %1058 = vst.msk [vmem:[#allocation4 + $0x30] sm:$0xff] %vm1051, %v1041
  %1059 = vst.msk [vmem:[#allocation4 + $0x38] sm:$0xff] %vm1051, %v1042
  %1060 = vst.msk [vmem:[#allocation4 + $0x40] sm:$0xff] %vm1051, %v1043
  %1061 = vst.msk [vmem:[#allocation4 + $0x48] sm:$0xff] %vm1051, %v1044
  %1062 = vst.msk [vmem:[#allocation4 + $0x50] sm:$0xff] %vm1051, %v1045
  %1063 = vst.msk [vmem:[#allocation4 + $0x58] sm:$0xff] %vm1051, %v1046
  %1064 = vst.msk [vmem:[#allocation4 + $0x60] sm:$0xff] %vm1051, %v1047
  %1065 = vst.msk [vmem:[#allocation4 + $0x68] sm:$0xff] %vm1051, %v1048
  %1066 = vst.msk [vmem:[#allocation4 + $0x70] sm:$0xff] %vm1051, %v1049
  %1067 = vst.msk [vmem:[#allocation4 + $0x78] sm:$0xff] %vm1051, %v1050
  %v1068 = vld [vmem:[#allocation5] sm:$0xff]
  %v1069 = vld [vmem:[#allocation5 + $0x8] sm:$0xff]
  %v1070 = vld [vmem:[#allocation5 + $0x10] sm:$0xff]
  %v1071 = vld [vmem:[#allocation5 + $0x18] sm:$0xff]
  %v1072 = vld [vmem:[#allocation5 + $0x20] sm:$0xff]
  %v1073 = vld [vmem:[#allocation5 + $0x28] sm:$0xff]
  %v1074 = vld [vmem:[#allocation5 + $0x30] sm:$0xff]
  %v1075 = vld [vmem:[#allocation5 + $0x38] sm:$0xff]
  %v1076 = vld [vmem:[#allocation5 + $0x40] sm:$0xff]
  %v1077 = vld [vmem:[#allocation5 + $0x48] sm:$0xff]
  %v1078 = vld [vmem:[#allocation5 + $0x50] sm:$0xff]
  %v1079 = vld [vmem:[#allocation5 + $0x58] sm:$0xff]
  %v1080 = vld [vmem:[#allocation5 + $0x60] sm:$0xff]
  %v1081 = vld [vmem:[#allocation5 + $0x68] sm:$0xff]
  %v1082 = vld [vmem:[#allocation5 + $0x70] sm:$0xff]
  %v1083 = vld [vmem:[#allocation5 + $0x78] sm:$0xff]
  %1085 = vset.pattern.permute.xlu0 0
  %1086 = vperm.xlu0 %1085, %v796
  %v1087 = vpop.permute.xlu0 %1086
  %1090 = vset.pattern.permute.xlu0 0
  %1091 = vperm.xlu0 %1090, %v798
  %v1092 = vpop.permute.xlu0 %1091
  %1095 = vset.pattern.permute.xlu0 0
  %1096 = vperm.xlu0 %1095, %v800
  %v1097 = vpop.permute.xlu0 %1096
  %1100 = vset.pattern.permute.xlu0 0
  %1101 = vperm.xlu0 %1100, %v802
  %v1102 = vpop.permute.xlu0 %1101
  %1105 = vset.pattern.permute.xlu0 0
  %1106 = vperm.xlu0 %1105, %v804
  %v1107 = vpop.permute.xlu0 %1106
  %1110 = vset.pattern.permute.xlu0 0
  %1111 = vperm.xlu0 %1110, %v806
  %v1112 = vpop.permute.xlu0 %1111
  %1115 = vset.pattern.permute.xlu0 0
  %1116 = vperm.xlu0 %1115, %v808
  %v1117 = vpop.permute.xlu0 %1116
  %1120 = vset.pattern.permute.xlu0 0
  %1121 = vperm.xlu0 %1120, %v810
  %v1122 = vpop.permute.xlu0 %1121
  %1125 = vset.pattern.permute.xlu0 0
  %1126 = vperm.xlu0 %1125, %v812
  %v1127 = vpop.permute.xlu0 %1126
  %1130 = vset.pattern.permute.xlu0 0
  %1131 = vperm.xlu0 %1130, %v814
  %v1132 = vpop.permute.xlu0 %1131
  %1135 = vset.pattern.permute.xlu0 0
  %1136 = vperm.xlu0 %1135, %v816
  %v1137 = vpop.permute.xlu0 %1136
  %1140 = vset.pattern.permute.xlu0 0
  %1141 = vperm.xlu0 %1140, %v818
  %v1142 = vpop.permute.xlu0 %1141
  %1145 = vset.pattern.permute.xlu0 0
  %1146 = vperm.xlu0 %1145, %v820
  %v1147 = vpop.permute.xlu0 %1146
  %1150 = vset.pattern.permute.xlu0 0
  %1151 = vperm.xlu0 %1150, %v822
  %v1152 = vpop.permute.xlu0 %1151
  %1155 = vset.pattern.permute.xlu0 0
  %1156 = vperm.xlu0 %1155, %v824
  %v1157 = vpop.permute.xlu0 %1156
  %1160 = vset.pattern.permute.xlu0 0
  %1161 = vperm.xlu0 %1160, %v826
  %v1162 = vpop.permute.xlu0 %1161
  %v1164 = vmul.f32 %v1087, %v1068
  %v1165 = vmul.f32 %v1092, %v1069
  %v1166 = vmul.f32 %v1097, %v1070
  %v1167 = vmul.f32 %v1102, %v1071
  %v1168 = vmul.f32 %v1107, %v1072
  %v1169 = vmul.f32 %v1112, %v1073
  %v1170 = vmul.f32 %v1117, %v1074
  %v1171 = vmul.f32 %v1122, %v1075
  %v1172 = vmul.f32 %v1127, %v1076
  %v1173 = vmul.f32 %v1132, %v1077
  %v1174 = vmul.f32 %v1137, %v1078
  %v1175 = vmul.f32 %v1142, %v1079
  %v1176 = vmul.f32 %v1147, %v1080
  %v1177 = vmul.f32 %v1152, %v1081
  %v1178 = vmul.f32 %v1157, %v1082
  %v1179 = vmul.f32 %v1162, %v1083
  %v1180 = vld [vmem:[%s2] sm:$0xff]
  %v1181 = vld [vmem:[%s2 + $0x8] sm:$0xff]
  %v1182 = vld [vmem:[%s2 + $0x10] sm:$0xff]
  %v1183 = vld [vmem:[%s2 + $0x18] sm:$0xff]
  %v1184 = vld [vmem:[%s2 + $0x20] sm:$0xff]
  %v1185 = vld [vmem:[%s2 + $0x28] sm:$0xff]
  %v1186 = vld [vmem:[%s2 + $0x30] sm:$0xff]
  %v1187 = vld [vmem:[%s2 + $0x38] sm:$0xff]
  %v1189 = vsel %vm442, %v924, 0
  %v1192 = vsel %vm442, %v926, 0
  %1194 = vmatpush.msra.mxu0 0.0
  %1195 = vmatpush.msra.mxu0 0.0
  %1196 = vmatpush.msra.mxu0 0.0
  %1197 = vmatpush.msra.mxu0 0.0
  %1198 = vmatpush.msra.mxu0 0.0
  %1199 = vmatpush.msra.mxu0 0.0
  %1200 = vmatpush.msra.mxu0 0.0
  %1201 = vmatpush.msra.mxu0 0.0
  %1202 = vmatpush.msra.mxu0 0.0
  %1203 = vmatpush.msra.mxu0 0.0
  %1204 = vmatpush.msra.mxu0 0.0
  %1205 = vmatpush.msra.mxu0 0.0
  %1206 = vmatpush.msra.mxu0 0.0
  %1207 = vmatpush.msra.mxu0 0.0
  %1208 = vmatpush.msra.mxu0 0.0
  %1209 = vmatpush.msra.mxu0 %v1180
  %1210 = vmatmul.f32.gmra.mxu0 %v1189
  %v1211 = vpop.f32.mrf.mxu0
  %v1212 = vadd.f32 0.0, %v1211
  %1213 = vmatmul.f32.gmra.mxu0 %v1192
  %v1214 = vpop.f32.mrf.mxu0
  %v1215 = vadd.f32 0.0, %v1214
  %1216 = vdwg.mxu0
  %v1218 = vsel %vm442, %v928, 0
  %v1221 = vsel %vm442, %v930, 0
  %1223 = vmatpush.msra.mxu0 0.0
  %1224 = vmatpush.msra.mxu0 0.0
  %1225 = vmatpush.msra.mxu0 0.0
  %1226 = vmatpush.msra.mxu0 0.0
  %1227 = vmatpush.msra.mxu0 0.0
  %1228 = vmatpush.msra.mxu0 0.0
  %1229 = vmatpush.msra.mxu0 0.0
  %1230 = vmatpush.msra.mxu0 0.0
  %1231 = vmatpush.msra.mxu0 0.0
  %1232 = vmatpush.msra.mxu0 0.0
  %1233 = vmatpush.msra.mxu0 0.0
  %1234 = vmatpush.msra.mxu0 0.0
  %1235 = vmatpush.msra.mxu0 0.0
  %1236 = vmatpush.msra.mxu0 0.0
  %1237 = vmatpush.msra.mxu0 0.0
  %1238 = vmatpush.msra.mxu0 %v1181
  %1239 = vmatmul.f32.gmra.mxu0 %v1218
  %v1240 = vpop.f32.mrf.mxu0
  %v1241 = vadd.f32 0.0, %v1240
  %1242 = vmatmul.f32.gmra.mxu0 %v1221
  %v1243 = vpop.f32.mrf.mxu0
  %v1244 = vadd.f32 0.0, %v1243
  %1245 = vdwg.mxu0
  %v1247 = vsel %vm442, %v932, 0
  %v1250 = vsel %vm442, %v934, 0
  %1252 = vmatpush.msra.mxu0 0.0
  %1253 = vmatpush.msra.mxu0 0.0
  %1254 = vmatpush.msra.mxu0 0.0
  %1255 = vmatpush.msra.mxu0 0.0
  %1256 = vmatpush.msra.mxu0 0.0
  %1257 = vmatpush.msra.mxu0 0.0
  %1258 = vmatpush.msra.mxu0 0.0
  %1259 = vmatpush.msra.mxu0 0.0
  %1260 = vmatpush.msra.mxu0 0.0
  %1261 = vmatpush.msra.mxu0 0.0
  %1262 = vmatpush.msra.mxu0 0.0
  %1263 = vmatpush.msra.mxu0 0.0
  %1264 = vmatpush.msra.mxu0 0.0
  %1265 = vmatpush.msra.mxu0 0.0
  %1266 = vmatpush.msra.mxu0 0.0
  %1267 = vmatpush.msra.mxu0 %v1182
  %1268 = vmatmul.f32.gmra.mxu0 %v1247
  %v1269 = vpop.f32.mrf.mxu0
  %v1270 = vadd.f32 0.0, %v1269
  %1271 = vmatmul.f32.gmra.mxu0 %v1250
  %v1272 = vpop.f32.mrf.mxu0
  %v1273 = vadd.f32 0.0, %v1272
  %1274 = vdwg.mxu0
  %v1276 = vsel %vm442, %v936, 0
  %v1279 = vsel %vm442, %v938, 0
  %1281 = vmatpush.msra.mxu0 0.0
  %1282 = vmatpush.msra.mxu0 0.0
  %1283 = vmatpush.msra.mxu0 0.0
  %1284 = vmatpush.msra.mxu0 0.0
  %1285 = vmatpush.msra.mxu0 0.0
  %1286 = vmatpush.msra.mxu0 0.0
  %1287 = vmatpush.msra.mxu0 0.0
  %1288 = vmatpush.msra.mxu0 0.0
  %1289 = vmatpush.msra.mxu0 0.0
  %1290 = vmatpush.msra.mxu0 0.0
  %1291 = vmatpush.msra.mxu0 0.0
  %1292 = vmatpush.msra.mxu0 0.0
  %1293 = vmatpush.msra.mxu0 0.0
  %1294 = vmatpush.msra.mxu0 0.0
  %1295 = vmatpush.msra.mxu0 0.0
  %1296 = vmatpush.msra.mxu0 %v1183
  %1297 = vmatmul.f32.gmra.mxu0 %v1276
  %v1298 = vpop.f32.mrf.mxu0
  %v1299 = vadd.f32 0.0, %v1298
  %1300 = vmatmul.f32.gmra.mxu0 %v1279
  %v1301 = vpop.f32.mrf.mxu0
  %v1302 = vadd.f32 0.0, %v1301
  %1303 = vdwg.mxu0
  %v1305 = vsel %vm442, %v940, 0
  %v1308 = vsel %vm442, %v942, 0
  %1310 = vmatpush.msra.mxu0 0.0
  %1311 = vmatpush.msra.mxu0 0.0
  %1312 = vmatpush.msra.mxu0 0.0
  %1313 = vmatpush.msra.mxu0 0.0
  %1314 = vmatpush.msra.mxu0 0.0
  %1315 = vmatpush.msra.mxu0 0.0
  %1316 = vmatpush.msra.mxu0 0.0
  %1317 = vmatpush.msra.mxu0 0.0
  %1318 = vmatpush.msra.mxu0 0.0
  %1319 = vmatpush.msra.mxu0 0.0
  %1320 = vmatpush.msra.mxu0 0.0
  %1321 = vmatpush.msra.mxu0 0.0
  %1322 = vmatpush.msra.mxu0 0.0
  %1323 = vmatpush.msra.mxu0 0.0
  %1324 = vmatpush.msra.mxu0 0.0
  %1325 = vmatpush.msra.mxu0 %v1184
  %1326 = vmatmul.f32.gmra.mxu0 %v1305
  %v1327 = vpop.f32.mrf.mxu0
  %v1328 = vadd.f32 0.0, %v1327
  %1329 = vmatmul.f32.gmra.mxu0 %v1308
  %v1330 = vpop.f32.mrf.mxu0
  %v1331 = vadd.f32 0.0, %v1330
  %1332 = vdwg.mxu0
  %v1334 = vsel %vm442, %v944, 0
  %v1337 = vsel %vm442, %v946, 0
  %1339 = vmatpush.msra.mxu0 0.0
  %1340 = vmatpush.msra.mxu0 0.0
  %1341 = vmatpush.msra.mxu0 0.0
  %1342 = vmatpush.msra.mxu0 0.0
  %1343 = vmatpush.msra.mxu0 0.0
  %1344 = vmatpush.msra.mxu0 0.0
  %1345 = vmatpush.msra.mxu0 0.0
  %1346 = vmatpush.msra.mxu0 0.0
  %1347 = vmatpush.msra.mxu0 0.0
  %1348 = vmatpush.msra.mxu0 0.0
  %1349 = vmatpush.msra.mxu0 0.0
  %1350 = vmatpush.msra.mxu0 0.0
  %1351 = vmatpush.msra.mxu0 0.0
  %1352 = vmatpush.msra.mxu0 0.0
  %1353 = vmatpush.msra.mxu0 0.0
  %1354 = vmatpush.msra.mxu0 %v1185
  %1355 = vmatmul.f32.gmra.mxu0 %v1334
  %v1356 = vpop.f32.mrf.mxu0
  %v1357 = vadd.f32 0.0, %v1356
  %1358 = vmatmul.f32.gmra.mxu0 %v1337
  %v1359 = vpop.f32.mrf.mxu0
  %v1360 = vadd.f32 0.0, %v1359
  %1361 = vdwg.mxu0
  %v1363 = vsel %vm442, %v948, 0
  %v1366 = vsel %vm442, %v950, 0
  %1368 = vmatpush.msra.mxu0 0.0
  %1369 = vmatpush.msra.mxu0 0.0
  %1370 = vmatpush.msra.mxu0 0.0
  %1371 = vmatpush.msra.mxu0 0.0
  %1372 = vmatpush.msra.mxu0 0.0
  %1373 = vmatpush.msra.mxu0 0.0
  %1374 = vmatpush.msra.mxu0 0.0
  %1375 = vmatpush.msra.mxu0 0.0
  %1376 = vmatpush.msra.mxu0 0.0
  %1377 = vmatpush.msra.mxu0 0.0
  %1378 = vmatpush.msra.mxu0 0.0
  %1379 = vmatpush.msra.mxu0 0.0
  %1380 = vmatpush.msra.mxu0 0.0
  %1381 = vmatpush.msra.mxu0 0.0
  %1382 = vmatpush.msra.mxu0 0.0
  %1383 = vmatpush.msra.mxu0 %v1186
  %1384 = vmatmul.f32.gmra.mxu0 %v1363
  %v1385 = vpop.f32.mrf.mxu0
  %v1386 = vadd.f32 0.0, %v1385
  %1387 = vmatmul.f32.gmra.mxu0 %v1366
  %v1388 = vpop.f32.mrf.mxu0
  %v1389 = vadd.f32 0.0, %v1388
  %1390 = vdwg.mxu0
  %v1392 = vsel %vm442, %v952, 0
  %v1395 = vsel %vm442, %v954, 0
  %1397 = vmatpush.msra.mxu0 0.0
  %1398 = vmatpush.msra.mxu0 0.0
  %1399 = vmatpush.msra.mxu0 0.0
  %1400 = vmatpush.msra.mxu0 0.0
  %1401 = vmatpush.msra.mxu0 0.0
  %1402 = vmatpush.msra.mxu0 0.0
  %1403 = vmatpush.msra.mxu0 0.0
  %1404 = vmatpush.msra.mxu0 0.0
  %1405 = vmatpush.msra.mxu0 0.0
  %1406 = vmatpush.msra.mxu0 0.0
  %1407 = vmatpush.msra.mxu0 0.0
  %1408 = vmatpush.msra.mxu0 0.0
  %1409 = vmatpush.msra.mxu0 0.0
  %1410 = vmatpush.msra.mxu0 0.0
  %1411 = vmatpush.msra.mxu0 0.0
  %1412 = vmatpush.msra.mxu0 %v1187
  %1413 = vmatmul.f32.gmra.mxu0 %v1392
  %v1414 = vpop.f32.mrf.mxu0
  %v1415 = vadd.f32 0.0, %v1414
  %1416 = vmatmul.f32.gmra.mxu0 %v1395
  %v1417 = vpop.f32.mrf.mxu0
  %v1418 = vadd.f32 0.0, %v1417
  %1419 = vdwg.mxu0
  %v1420 = vadd.f32 %v1164, %v1212
  %v1421 = vadd.f32 %v1165, %v1215
  %v1422 = vadd.f32 %v1166, %v1241
  %v1423 = vadd.f32 %v1167, %v1244
  %v1424 = vadd.f32 %v1168, %v1270
  %v1425 = vadd.f32 %v1169, %v1273
  %v1426 = vadd.f32 %v1170, %v1299
  %v1427 = vadd.f32 %v1171, %v1302
  %v1428 = vadd.f32 %v1172, %v1328
  %v1429 = vadd.f32 %v1173, %v1331
  %v1430 = vadd.f32 %v1174, %v1357
  %v1431 = vadd.f32 %v1175, %v1360
  %v1432 = vadd.f32 %v1176, %v1386
  %v1433 = vadd.f32 %v1177, %v1389
  %v1434 = vadd.f32 %v1178, %v1415
  %v1435 = vadd.f32 %v1179, %v1418
  %1436 = vst.msk [vmem:[#allocation5] sm:$0xff] %vm442, %v1420
  %1437 = vst.msk [vmem:[#allocation5 + $0x8] sm:$0xff] %vm442, %v1421
  %1438 = vst.msk [vmem:[#allocation5 + $0x10] sm:$0xff] %vm442, %v1422
  %1439 = vst.msk [vmem:[#allocation5 + $0x18] sm:$0xff] %vm442, %v1423
  %1440 = vst.msk [vmem:[#allocation5 + $0x20] sm:$0xff] %vm442, %v1424
  %1441 = vst.msk [vmem:[#allocation5 + $0x28] sm:$0xff] %vm442, %v1425
  %1442 = vst.msk [vmem:[#allocation5 + $0x30] sm:$0xff] %vm442, %v1426
  %1443 = vst.msk [vmem:[#allocation5 + $0x38] sm:$0xff] %vm442, %v1427
  %1444 = vst.msk [vmem:[#allocation5 + $0x40] sm:$0xff] %vm442, %v1428
  %1445 = vst.msk [vmem:[#allocation5 + $0x48] sm:$0xff] %vm442, %v1429
  %1446 = vst.msk [vmem:[#allocation5 + $0x50] sm:$0xff] %vm442, %v1430
  %1447 = vst.msk [vmem:[#allocation5 + $0x58] sm:$0xff] %vm442, %v1431
  %1448 = vst.msk [vmem:[#allocation5 + $0x60] sm:$0xff] %vm442, %v1432
  %1449 = vst.msk [vmem:[#allocation5 + $0x68] sm:$0xff] %vm442, %v1433
  %1450 = vst.msk [vmem:[#allocation5 + $0x70] sm:$0xff] %vm442, %v1434
  %1451 = vst.msk [vmem:[#allocation5 + $0x78] sm:$0xff] %vm442, %v1435
  %1452 = vst.msk [vmem:[#allocation3] sm:$0xff] %vm1051, %v763
  %1453 = vst.msk [vmem:[#allocation3 + $0x8] sm:$0xff] %vm1051, %v764
  %1454 = vst.msk [vmem:[#allocation3 + $0x10] sm:$0xff] %vm1051, %v765
  %1455 = vst.msk [vmem:[#allocation3 + $0x18] sm:$0xff] %vm1051, %v766
  %1456 = vst.msk [vmem:[#allocation3 + $0x20] sm:$0xff] %vm1051, %v767
  %1457 = vst.msk [vmem:[#allocation3 + $0x28] sm:$0xff] %vm1051, %v768
  %1458 = vst.msk [vmem:[#allocation3 + $0x30] sm:$0xff] %vm1051, %v769
  %1459 = vst.msk [vmem:[#allocation3 + $0x38] sm:$0xff] %vm1051, %v770
  %1460 = vst.msk [vmem:[#allocation3 + $0x40] sm:$0xff] %vm1051, %v771
  %1461 = vst.msk [vmem:[#allocation3 + $0x48] sm:$0xff] %vm1051, %v772
  %1462 = vst.msk [vmem:[#allocation3 + $0x50] sm:$0xff] %vm1051, %v773
  %1463 = vst.msk [vmem:[#allocation3 + $0x58] sm:$0xff] %vm1051, %v774
  %1464 = vst.msk [vmem:[#allocation3 + $0x60] sm:$0xff] %vm1051, %v775
  %1465 = vst.msk [vmem:[#allocation3 + $0x68] sm:$0xff] %vm1051, %v776
  %1466 = vst.msk [vmem:[#allocation3 + $0x70] sm:$0xff] %vm1051, %v777
  %1467 = vst.msk [vmem:[#allocation3 + $0x78] sm:$0xff] %vm1051, %v778
  // Predicated region
  $region22: #{cross_attention_forward.8} parent=0 // pred_check
    %p1468 = pneg %p17
  $region23: #{cross_attention_forward.8} parent=0 // pred_check_branch
    %1470 = sbr.rel (%p1468) target = $region25
  $region24: #{cross_attention_forward.8} parent=0 // pred_region
    %v1471 = vld [vmem:[#allocation4] sm:$0xff]
    %v1472 = vld [vmem:[#allocation4 + $0x8] sm:$0xff]
    %v1473 = vld [vmem:[#allocation4 + $0x10] sm:$0xff]
    %v1474 = vld [vmem:[#allocation4 + $0x18] sm:$0xff]
    %v1475 = vld [vmem:[#allocation4 + $0x20] sm:$0xff]
    %v1476 = vld [vmem:[#allocation4 + $0x28] sm:$0xff]
    %v1477 = vld [vmem:[#allocation4 + $0x30] sm:$0xff]
    %v1478 = vld [vmem:[#allocation4 + $0x38] sm:$0xff]
    %v1479 = vld [vmem:[#allocation4 + $0x40] sm:$0xff]
    %v1480 = vld [vmem:[#allocation4 + $0x48] sm:$0xff]
    %v1481 = vld [vmem:[#allocation4 + $0x50] sm:$0xff]
    %v1482 = vld [vmem:[#allocation4 + $0x58] sm:$0xff]
    %v1483 = vld [vmem:[#allocation4 + $0x60] sm:$0xff]
    %v1484 = vld [vmem:[#allocation4 + $0x68] sm:$0xff]
    %v1485 = vld [vmem:[#allocation4 + $0x70] sm:$0xff]
    %v1486 = vld [vmem:[#allocation4 + $0x78] sm:$0xff]
    %v1487 = vrcp.pop %v1471
    %v1488 = vrcp.pop %v1472
    %v1489 = vrcp.pop %v1473
    %v1490 = vrcp.pop %v1474
    %v1491 = vrcp.pop %v1475
    %v1492 = vrcp.pop %v1476
    %v1493 = vrcp.pop %v1477
    %v1494 = vrcp.pop %v1478
    %v1495 = vrcp.pop %v1479
    %v1496 = vrcp.pop %v1480
    %v1497 = vrcp.pop %v1481
    %v1498 = vrcp.pop %v1482
    %v1499 = vrcp.pop %v1483
    %v1500 = vrcp.pop %v1484
    %v1501 = vrcp.pop %v1485
    %v1502 = vrcp.pop %v1486
    %v1503 = vld [vmem:[#allocation5] sm:$0xff]
    %v1504 = vld [vmem:[#allocation5 + $0x8] sm:$0xff]
    %v1505 = vld [vmem:[#allocation5 + $0x10] sm:$0xff]
    %v1506 = vld [vmem:[#allocation5 + $0x18] sm:$0xff]
    %v1507 = vld [vmem:[#allocation5 + $0x20] sm:$0xff]
    %v1508 = vld [vmem:[#allocation5 + $0x28] sm:$0xff]
    %v1509 = vld [vmem:[#allocation5 + $0x30] sm:$0xff]
    %v1510 = vld [vmem:[#allocation5 + $0x38] sm:$0xff]
    %v1511 = vld [vmem:[#allocation5 + $0x40] sm:$0xff]
    %v1512 = vld [vmem:[#allocation5 + $0x48] sm:$0xff]
    %v1513 = vld [vmem:[#allocation5 + $0x50] sm:$0xff]
    %v1514 = vld [vmem:[#allocation5 + $0x58] sm:$0xff]
    %v1515 = vld [vmem:[#allocation5 + $0x60] sm:$0xff]
    %v1516 = vld [vmem:[#allocation5 + $0x68] sm:$0xff]
    %v1517 = vld [vmem:[#allocation5 + $0x70] sm:$0xff]
    %v1518 = vld [vmem:[#allocation5 + $0x78] sm:$0xff]
    %1520 = vset.pattern.permute.xlu0 0
    %1521 = vperm.xlu0 %1520, %v1487
    %v1522 = vpop.permute.xlu0 %1521
    %1525 = vset.pattern.permute.xlu0 0
    %1526 = vperm.xlu0 %1525, %v1488
    %v1527 = vpop.permute.xlu0 %1526
    %1530 = vset.pattern.permute.xlu0 0
    %1531 = vperm.xlu0 %1530, %v1489
    %v1532 = vpop.permute.xlu0 %1531
    %1535 = vset.pattern.permute.xlu0 0
    %1536 = vperm.xlu0 %1535, %v1490
    %v1537 = vpop.permute.xlu0 %1536
    %1540 = vset.pattern.permute.xlu0 0
    %1541 = vperm.xlu0 %1540, %v1491
    %v1542 = vpop.permute.xlu0 %1541
    %1545 = vset.pattern.permute.xlu0 0
    %1546 = vperm.xlu0 %1545, %v1492
    %v1547 = vpop.permute.xlu0 %1546
    %1550 = vset.pattern.permute.xlu0 0
    %1551 = vperm.xlu0 %1550, %v1493
    %v1552 = vpop.permute.xlu0 %1551
    %1555 = vset.pattern.permute.xlu0 0
    %1556 = vperm.xlu0 %1555, %v1494
    %v1557 = vpop.permute.xlu0 %1556
    %1560 = vset.pattern.permute.xlu0 0
    %1561 = vperm.xlu0 %1560, %v1495
    %v1562 = vpop.permute.xlu0 %1561
    %1565 = vset.pattern.permute.xlu0 0
    %1566 = vperm.xlu0 %1565, %v1496
    %v1567 = vpop.permute.xlu0 %1566
    %1570 = vset.pattern.permute.xlu0 0
    %1571 = vperm.xlu0 %1570, %v1497
    %v1572 = vpop.permute.xlu0 %1571
    %1575 = vset.pattern.permute.xlu0 0
    %1576 = vperm.xlu0 %1575, %v1498
    %v1577 = vpop.permute.xlu0 %1576
    %1580 = vset.pattern.permute.xlu0 0
    %1581 = vperm.xlu0 %1580, %v1499
    %v1582 = vpop.permute.xlu0 %1581
    %1585 = vset.pattern.permute.xlu0 0
    %1586 = vperm.xlu0 %1585, %v1500
    %v1587 = vpop.permute.xlu0 %1586
    %1590 = vset.pattern.permute.xlu0 0
    %1591 = vperm.xlu0 %1590, %v1501
    %v1592 = vpop.permute.xlu0 %1591
    %1595 = vset.pattern.permute.xlu0 0
    %1596 = vperm.xlu0 %1595, %v1502
    %v1597 = vpop.permute.xlu0 %1596
    %v1599 = vmul.f32 %v1503, %v1522
    %v1600 = vmul.f32 %v1504, %v1527
    %v1601 = vmul.f32 %v1505, %v1532
    %v1602 = vmul.f32 %v1506, %v1537
    %v1603 = vmul.f32 %v1507, %v1542
    %v1604 = vmul.f32 %v1508, %v1547
    %v1605 = vmul.f32 %v1509, %v1552
    %v1606 = vmul.f32 %v1510, %v1557
    %v1607 = vmul.f32 %v1511, %v1562
    %v1608 = vmul.f32 %v1512, %v1567
    %v1609 = vmul.f32 %v1513, %v1572
    %v1610 = vmul.f32 %v1514, %v1577
    %v1611 = vmul.f32 %v1515, %v1582
    %v1612 = vmul.f32 %v1516, %v1587
    %v1613 = vmul.f32 %v1517, %v1592
    %v1614 = vmul.f32 %v1518, %v1597
    %1615 = vst.msk [vmem:[%s4] sm:$0xff] %vm442, %v1599
    %1616 = vst.msk [vmem:[%s4 + $0x8] sm:$0xff] %vm442, %v1600
    %1617 = vst.msk [vmem:[%s4 + $0x10] sm:$0xff] %vm442, %v1601
    %1618 = vst.msk [vmem:[%s4 + $0x18] sm:$0xff] %vm442, %v1602
    %1619 = vst.msk [vmem:[%s4 + $0x20] sm:$0xff] %vm442, %v1603
    %1620 = vst.msk [vmem:[%s4 + $0x28] sm:$0xff] %vm442, %v1604
    %1621 = vst.msk [vmem:[%s4 + $0x30] sm:$0xff] %vm442, %v1605
    %1622 = vst.msk [vmem:[%s4 + $0x38] sm:$0xff] %vm442, %v1606
    %1623 = vst.msk [vmem:[%s4 + $0x40] sm:$0xff] %vm442, %v1607
    %1624 = vst.msk [vmem:[%s4 + $0x48] sm:$0xff] %vm442, %v1608
    %1625 = vst.msk [vmem:[%s4 + $0x50] sm:$0xff] %vm442, %v1609
    %1626 = vst.msk [vmem:[%s4 + $0x58] sm:$0xff] %vm442, %v1610
    %1627 = vst.msk [vmem:[%s4 + $0x60] sm:$0xff] %vm442, %v1611
    %1628 = vst.msk [vmem:[%s4 + $0x68] sm:$0xff] %vm442, %v1612
    %1629 = vst.msk [vmem:[%s4 + $0x70] sm:$0xff] %vm442, %v1613
    %1630 = vst.msk [vmem:[%s4 + $0x78] sm:$0xff] %vm442, %v1614
  $region25: #{cross_attention_forward.8} parent=0 // pred_fallthru
    _
  // Predicated region
  $region26: #{cross_attention_forward.8} parent=0 // pred_check
    _
  $region27: #{cross_attention_forward.8} parent=0 // pred_check_branch
    %1632 = sbr.rel (0) target = $region29
  $region28: #{cross_attention_forward.8} parent=0 // pred_region
    _
  $region29: #{cross_attention_forward.8} parent=0 // pred_fallthru
    _
  // Predicated region
  $region30: #{cross_attention_forward.8} parent=0 // pred_check
    _
  $region31: #{cross_attention_forward.8} parent=0 // pred_check_branch
    %1634 = sbr.rel (0) target = $region33
  $region32: #{cross_attention_forward.8} parent=0 // pred_region
    _
  $region33: #{cross_attention_forward.8} parent=0 // pred_fallthru
    _

</llo_original>
